<compile_context>
chip_gen: v7x
topology: tpu7x:2x2x1
jax: 0.10.0
libtpu: 0.0.40
codegen_flags: <defaults>
</compile_context>

<pallas_src>
import functools

import jax
import jax.numpy as jnp
from jax.experimental import pallas as pl
from jax.experimental.pallas import tpu as pltpu


def _spectral_mul_kernel(xr_ref, xi_ref, wr_ref, wi_ref, or_ref, oi_ref):
    # xr/xi : (1, C_in, tile_k)      current batch n, mode tile k   (real / imag)
    # wr/wi : (C_in, C_out, tile_k)  per-mode complex weights       (real / imag)
    # or/oi : (1, C_out, tile_k)
    c_in = wr_ref.shape[0]
    xr = xr_ref[0]          # (C_in, tile_k)
    xi = xi_ref[0]
    wr = wr_ref[...]        # (C_in, C_out, tile_k)
    wi = wi_ref[...]

    # out[o, k] = sum_i (xr + j*xi)[i, k] * (wr + j*wi)[i, o, k]
    acc_r = xr[0:1, :] * wr[0] - xi[0:1, :] * wi[0]
    acc_i = xr[0:1, :] * wi[0] + xi[0:1, :] * wr[0]
    for i in range(1, c_in):  # static unroll; C_in is small
        acc_r = acc_r + xr[i:i + 1, :] * wr[i] - xi[i:i + 1, :] * wi[i]
        acc_i = acc_i + xr[i:i + 1, :] * wi[i] + xi[i:i + 1, :] * wr[i]

    or_ref[0] = acc_r.astype(or_ref.dtype)
    oi_ref[0] = acc_i.astype(oi_ref.dtype)


def _pick_tile(k_pad):
    # largest multiple-of-128 tile <= 2048 that divides the padded mode count
    for t in (2048, 1024, 512, 256, 128):
        if k_pad % t == 0:
            return t
    return 128


def spectral_conv3d_forward(x, params, *, modes1, modes2, modes3):
    """x: (N, C_in, D, H, W) float32 -> (N, C_out, D, H, W) float32."""
    N, C_in, D, H, W = x.shape
    W_r = W // 2 + 1
    C_out = params["w1_r"].shape[1]
    m1, m2, m3 = modes1, modes2, modes3
    M = m1 * m2 * m3
    K = 4 * M

    # TODO(synk): rfftn / irfftn have no Pallas TPU equivalent; they run as XLA FFT ops.
    x_ft = jnp.fft.rfftn(x, axes=(-3, -2, -1))  # (N, C_in, D, H, W_r) complex64

    # Gather the 4 low/high-frequency corner blocks (tiny tensors) and flatten the
    # mode axes last so the Pallas lane dim is K = 4*m1*m2*m3 (multiple of 128 after pad).
    corners = jnp.stack(
        [
            x_ft[:, :, :m1, :m2, :m3],
            x_ft[:, :, -m1:, :m2, :m3],
            x_ft[:, :, :m1, -m2:, :m3],
            x_ft[:, :, -m1:, -m2:, :m3],
        ],
        axis=0,
    )  # (4, N, C_in, m1, m2, m3)
    xc = jnp.transpose(corners, (1, 2, 0, 3, 4, 5)).reshape(N, C_in, K)
    xr = jnp.real(xc).astype(jnp.float32)
    xi = jnp.imag(xc).astype(jnp.float32)

    # Weights: (4, C_in, C_out, m1, m2, m3) -> (C_in, C_out, 4*M), modes last.
    w_stack_r = jnp.stack(
        [params["w1_r"], params["w2_r"], params["w3_r"], params["w4_r"]], axis=0)
    w_stack_i = jnp.stack(
        [params["w1_i"], params["w2_i"], params["w3_i"], params["w4_i"]], axis=0)
    wr = jnp.transpose(w_stack_r, (1, 2, 0, 3, 4, 5)).reshape(C_in, C_out, K)
    wi = jnp.transpose(w_stack_i, (1, 2, 0, 3, 4, 5)).reshape(C_in, C_out, K)

    # Pad the mode axis to a multiple of 128 lanes (zero modes contribute zero).
    K_pad = ((K + 127) // 128) * 128
    tile_k = _pick_tile(K_pad)
    pad = K_pad - K
    if pad:
        xr = jnp.pad(xr, ((0, 0), (0, 0), (0, pad)))
        xi = jnp.pad(xi, ((0, 0), (0, 0), (0, pad)))
        wr = jnp.pad(wr, ((0, 0), (0, 0), (0, pad)))
        wi = jnp.pad(wi, ((0, 0), (0, 0), (0, pad)))

    out_r, out_i = pl.pallas_call(
        _spectral_mul_kernel,
        out_shape=(
            jax.ShapeDtypeStruct((N, C_out, K_pad), jnp.float32),
            jax.ShapeDtypeStruct((N, C_out, K_pad), jnp.float32),
        ),
        grid_spec=pltpu.PrefetchScalarGridSpec(
            num_scalar_prefetch=0,
            grid=(N, K_pad // tile_k),
            in_specs=[
                pl.BlockSpec((1, C_in, tile_k), lambda n, k: (n, 0, k)),
                pl.BlockSpec((1, C_in, tile_k), lambda n, k: (n, 0, k)),
                pl.BlockSpec((C_in, C_out, tile_k), lambda n, k: (0, 0, k)),
                pl.BlockSpec((C_in, C_out, tile_k), lambda n, k: (0, 0, k)),
            ],
            out_specs=[
                pl.BlockSpec((1, C_out, tile_k), lambda n, k: (n, 0, k)),
                pl.BlockSpec((1, C_out, tile_k), lambda n, k: (n, 0, k)),
            ],
        ),
        compiler_params=pltpu.CompilerParams(
            dimension_semantics=("parallel", "parallel"),
        ),
    )(xr, xi, wr, wi)

    # Reassemble the complex spectrum corners and scatter into the zero spectrum.
    out_c = (out_r[:, :, :K] + 1j * out_i[:, :, :K]).reshape(N, C_out, 4, m1, m2, m3)
    out_ft = jnp.zeros((N, C_out, D, H, W_r), jnp.complex64)
    out_ft = out_ft.at[:, :, :m1, :m2, :m3].set(out_c[:, :, 0])
    out_ft = out_ft.at[:, :, -m1:, :m2, :m3].set(out_c[:, :, 1])
    out_ft = out_ft.at[:, :, :m1, -m2:, :m3].set(out_c[:, :, 2])
    out_ft = out_ft.at[:, :, -m1:, -m2:, :m3].set(out_c[:, :, 3])

    return jnp.fft.irfftn(out_ft, s=(D, H, W), axes=(-3, -2, -1))


def init_params(key, in_channels, out_channels, modes1, modes2, modes3):
    # Matches torch: scale * rand(..., dtype=cfloat) -> uniform [0,1) real & imag.
    scale = 1.0 / (in_channels * out_channels)
    shape = (in_channels, out_channels, modes1, modes2, modes3)
    ks = jax.random.split(key, 8)
    u = lambda k: scale * jax.random.uniform(k, shape, jnp.float32)
    return {
        "w1_r": u(ks[0]), "w1_i": u(ks[1]),
        "w2_r": u(ks[2]), "w2_i": u(ks[3]),
        "w3_r": u(ks[4]), "w3_i": u(ks[5]),
        "w4_r": u(ks[6]), "w4_i": u(ks[7]),
    }


def reference_forward(x, params, *, modes1, modes2, modes3):
    """Pure-JAX reference mirroring the PyTorch module."""
    N, C_in, D, H, W = x.shape
    W_r = W // 2 + 1
    C_out = params["w1_r"].shape[1]
    m1, m2, m3 = modes1, modes2, modes3

    x_ft = jnp.fft.rfftn(x, axes=(-3, -2, -1))

    def cmul(inp, wr, wi):
        return jnp.einsum("bixyz,ioxyz->boxyz", inp, (wr + 1j * wi).astype(jnp.complex64))

    out_ft = jnp.zeros((N, C_out, D, H, W_r), jnp.complex64)
    out_ft = out_ft.at[:, :, :m1, :m2, :m3].set(
        cmul(x_ft[:, :, :m1, :m2, :m3], params["w1_r"], params["w1_i"]))
    out_ft = out_ft.at[:, :, -m1:, :m2, :m3].set(
        cmul(x_ft[:, :, -m1:, :m2, :m3], params["w2_r"], params["w2_i"]))
    out_ft = out_ft.at[:, :, :m1, -m2:, :m3].set(
        cmul(x_ft[:, :, :m1, -m2:, :m3], params["w3_r"], params["w3_i"]))
    out_ft = out_ft.at[:, :, -m1:, -m2:, :m3].set(
        cmul(x_ft[:, :, -m1:, -m2:, :m3], params["w4_r"], params["w4_i"]))

    return jnp.fft.irfftn(out_ft, s=(D, H, W), axes=(-3, -2, -1))


if __name__ == "__main__":
    # Small shapes consistent with the module.
    N, C_in, C_out = 2, 4, 8
    modes = 4            # modes1 = modes2 = modes3 = 4  -> K = 4*64 = 256 lanes
    D = H = W = 16

    key = jax.random.PRNGKey(0)
    kx, kp = jax.random.split(key)
    x = jax.random.normal(kx, (N, C_in, D, H, W), jnp.float32)
    params = init_params(kp, C_in, C_out, modes, modes, modes)

    fwd = jax.jit(functools.partial(
        spectral_conv3d_forward, modes1=modes, modes2=modes, modes3=modes))
    out = jax.block_until_ready(fwd(x, params))

    ref = reference_forward(x, params, modes1=modes, modes2=modes, modes3=modes)
    assert out.shape == (N, C_out, D, H, W)
    assert jnp.allclose(out, ref, atol=1e-5, rtol=1e-4), "mismatch vs JAX reference"

    print("KERNEL_OK")
</pallas_src>

<mosaic_0001>
module attributes {stable_mosaic.version = 11 : i64} {
  func.func @_spectral_mul_kernel(%arg0: i32, %arg1: i32, %arg2: memref<1x4x256xf32, #tpu.memory_space<vmem>>, %arg3: memref<1x4x256xf32, #tpu.memory_space<vmem>>, %arg4: memref<4x8x256xf32, #tpu.memory_space<vmem>>, %arg5: memref<4x8x256xf32, #tpu.memory_space<vmem>>, %arg6: memref<1x8x256xf32, #tpu.memory_space<vmem>>, %arg7: memref<1x8x256xf32, #tpu.memory_space<vmem>>) attributes {dimension_semantics = [#tpu.dimension_semantics<parallel>, #tpu.dimension_semantics<parallel>], iteration_bounds = array<i64: 2, 1>, scalar_prefetch = 0 : i64, scratch_operands = 0 : i64, tpu.core_type = #tpu.core_type<tc>, window_params = [{transform_indices = @transform_0, window_bounds = array<i64: 1, 4, 256>}, {transform_indices = @transform_1, window_bounds = array<i64: 1, 4, 256>}, {transform_indices = @transform_2, window_bounds = array<i64: 4, 8, 256>}, {transform_indices = @transform_3, window_bounds = array<i64: 4, 8, 256>}, {transform_indices = @transform_4, window_bounds = array<i64: 1, 8, 256>}, {transform_indices = @transform_5, window_bounds = array<i64: 1, 8, 256>}]} {
    %c0 = arith.constant 0 : index
    %c0_0 = arith.constant 0 : index
    %c0_1 = arith.constant 0 : index
    %0 = vector.load %arg2[%c0, %c0_0, %c0_1] : memref<1x4x256xf32, #tpu.memory_space<vmem>>, vector<1x4x256xf32>
    %1 = vector.shape_cast %0 : vector<1x4x256xf32> to vector<4x256xf32>
    %c0_2 = arith.constant 0 : index
    %c0_3 = arith.constant 0 : index
    %c0_4 = arith.constant 0 : index
    %2 = vector.load %arg3[%c0_2, %c0_3, %c0_4] : memref<1x4x256xf32, #tpu.memory_space<vmem>>, vector<1x4x256xf32>
    %3 = vector.shape_cast %2 : vector<1x4x256xf32> to vector<4x256xf32>
    %c0_5 = arith.constant 0 : index
    %c0_6 = arith.constant 0 : index
    %c0_7 = arith.constant 0 : index
    %4 = vector.load %arg4[%c0_5, %c0_6, %c0_7] : memref<4x8x256xf32, #tpu.memory_space<vmem>>, vector<4x8x256xf32>
    %c0_8 = arith.constant 0 : index
    %c0_9 = arith.constant 0 : index
    %c0_10 = arith.constant 0 : index
    %5 = vector.load %arg5[%c0_8, %c0_9, %c0_10] : memref<4x8x256xf32, #tpu.memory_space<vmem>>, vector<4x8x256xf32>
    %6 = vector.extract_strided_slice %1 {offsets = [0, 0], sizes = [1, 256], strides = [1, 1]} : vector<4x256xf32> to vector<1x256xf32>
    %7 = vector.extract_strided_slice %4 {offsets = [0, 0, 0], sizes = [1, 8, 256], strides = [1, 1, 1]} : vector<4x8x256xf32> to vector<1x8x256xf32>
    %8 = vector.shape_cast %7 : vector<1x8x256xf32> to vector<8x256xf32>
    %9 = vector.broadcast %6 : vector<1x256xf32> to vector<8x256xf32>
    %10 = arith.mulf %9, %8 : vector<8x256xf32>
    %11 = vector.extract_strided_slice %3 {offsets = [0, 0], sizes = [1, 256], strides = [1, 1]} : vector<4x256xf32> to vector<1x256xf32>
    %12 = vector.extract_strided_slice %5 {offsets = [0, 0, 0], sizes = [1, 8, 256], strides = [1, 1, 1]} : vector<4x8x256xf32> to vector<1x8x256xf32>
    %13 = vector.shape_cast %12 : vector<1x8x256xf32> to vector<8x256xf32>
    %14 = vector.broadcast %11 : vector<1x256xf32> to vector<8x256xf32>
    %15 = arith.mulf %14, %13 : vector<8x256xf32>
    %16 = arith.subf %10, %15 : vector<8x256xf32>
    %17 = vector.extract_strided_slice %1 {offsets = [0, 0], sizes = [1, 256], strides = [1, 1]} : vector<4x256xf32> to vector<1x256xf32>
    %18 = vector.extract_strided_slice %5 {offsets = [0, 0, 0], sizes = [1, 8, 256], strides = [1, 1, 1]} : vector<4x8x256xf32> to vector<1x8x256xf32>
    %19 = vector.shape_cast %18 : vector<1x8x256xf32> to vector<8x256xf32>
    %20 = vector.broadcast %17 : vector<1x256xf32> to vector<8x256xf32>
    %21 = arith.mulf %20, %19 : vector<8x256xf32>
    %22 = vector.extract_strided_slice %3 {offsets = [0, 0], sizes = [1, 256], strides = [1, 1]} : vector<4x256xf32> to vector<1x256xf32>
    %23 = vector.extract_strided_slice %4 {offsets = [0, 0, 0], sizes = [1, 8, 256], strides = [1, 1, 1]} : vector<4x8x256xf32> to vector<1x8x256xf32>
    %24 = vector.shape_cast %23 : vector<1x8x256xf32> to vector<8x256xf32>
    %25 = vector.broadcast %22 : vector<1x256xf32> to vector<8x256xf32>
    %26 = arith.mulf %25, %24 : vector<8x256xf32>
    %27 = arith.addf %21, %26 : vector<8x256xf32>
    %28 = vector.extract_strided_slice %1 {offsets = [1, 0], sizes = [1, 256], strides = [1, 1]} : vector<4x256xf32> to vector<1x256xf32>
    %29 = vector.extract_strided_slice %4 {offsets = [1, 0, 0], sizes = [1, 8, 256], strides = [1, 1, 1]} : vector<4x8x256xf32> to vector<1x8x256xf32>
    %30 = vector.shape_cast %29 : vector<1x8x256xf32> to vector<8x256xf32>
    %31 = vector.broadcast %28 : vector<1x256xf32> to vector<8x256xf32>
    %32 = arith.mulf %31, %30 : vector<8x256xf32>
    %33 = arith.addf %16, %32 : vector<8x256xf32>
    %34 = vector.extract_strided_slice %3 {offsets = [1, 0], sizes = [1, 256], strides = [1, 1]} : vector<4x256xf32> to vector<1x256xf32>
    %35 = vector.extract_strided_slice %5 {offsets = [1, 0, 0], sizes = [1, 8, 256], strides = [1, 1, 1]} : vector<4x8x256xf32> to vector<1x8x256xf32>
    %36 = vector.shape_cast %35 : vector<1x8x256xf32> to vector<8x256xf32>
    %37 = vector.broadcast %34 : vector<1x256xf32> to vector<8x256xf32>
    %38 = arith.mulf %37, %36 : vector<8x256xf32>
    %39 = arith.subf %33, %38 : vector<8x256xf32>
    %40 = vector.extract_strided_slice %1 {offsets = [1, 0], sizes = [1, 256], strides = [1, 1]} : vector<4x256xf32> to vector<1x256xf32>
    %41 = vector.extract_strided_slice %5 {offsets = [1, 0, 0], sizes = [1, 8, 256], strides = [1, 1, 1]} : vector<4x8x256xf32> to vector<1x8x256xf32>
    %42 = vector.shape_cast %41 : vector<1x8x256xf32> to vector<8x256xf32>
    %43 = vector.broadcast %40 : vector<1x256xf32> to vector<8x256xf32>
    %44 = arith.mulf %43, %42 : vector<8x256xf32>
    %45 = arith.addf %27, %44 : vector<8x256xf32>
    %46 = vector.extract_strided_slice %3 {offsets = [1, 0], sizes = [1, 256], strides = [1, 1]} : vector<4x256xf32> to vector<1x256xf32>
    %47 = vector.extract_strided_slice %4 {offsets = [1, 0, 0], sizes = [1, 8, 256], strides = [1, 1, 1]} : vector<4x8x256xf32> to vector<1x8x256xf32>
    %48 = vector.shape_cast %47 : vector<1x8x256xf32> to vector<8x256xf32>
    %49 = vector.broadcast %46 : vector<1x256xf32> to vector<8x256xf32>
    %50 = arith.mulf %49, %48 : vector<8x256xf32>
    %51 = arith.addf %45, %50 : vector<8x256xf32>
    %52 = vector.extract_strided_slice %1 {offsets = [2, 0], sizes = [1, 256], strides = [1, 1]} : vector<4x256xf32> to vector<1x256xf32>
    %53 = vector.extract_strided_slice %4 {offsets = [2, 0, 0], sizes = [1, 8, 256], strides = [1, 1, 1]} : vector<4x8x256xf32> to vector<1x8x256xf32>
    %54 = vector.shape_cast %53 : vector<1x8x256xf32> to vector<8x256xf32>
    %55 = vector.broadcast %52 : vector<1x256xf32> to vector<8x256xf32>
    %56 = arith.mulf %55, %54 : vector<8x256xf32>
    %57 = arith.addf %39, %56 : vector<8x256xf32>
    %58 = vector.extract_strided_slice %3 {offsets = [2, 0], sizes = [1, 256], strides = [1, 1]} : vector<4x256xf32> to vector<1x256xf32>
    %59 = vector.extract_strided_slice %5 {offsets = [2, 0, 0], sizes = [1, 8, 256], strides = [1, 1, 1]} : vector<4x8x256xf32> to vector<1x8x256xf32>
    %60 = vector.shape_cast %59 : vector<1x8x256xf32> to vector<8x256xf32>
    %61 = vector.broadcast %58 : vector<1x256xf32> to vector<8x256xf32>
    %62 = arith.mulf %61, %60 : vector<8x256xf32>
    %63 = arith.subf %57, %62 : vector<8x256xf32>
    %64 = vector.extract_strided_slice %1 {offsets = [2, 0], sizes = [1, 256], strides = [1, 1]} : vector<4x256xf32> to vector<1x256xf32>
    %65 = vector.extract_strided_slice %5 {offsets = [2, 0, 0], sizes = [1, 8, 256], strides = [1, 1, 1]} : vector<4x8x256xf32> to vector<1x8x256xf32>
    %66 = vector.shape_cast %65 : vector<1x8x256xf32> to vector<8x256xf32>
    %67 = vector.broadcast %64 : vector<1x256xf32> to vector<8x256xf32>
    %68 = arith.mulf %67, %66 : vector<8x256xf32>
    %69 = arith.addf %51, %68 : vector<8x256xf32>
    %70 = vector.extract_strided_slice %3 {offsets = [2, 0], sizes = [1, 256], strides = [1, 1]} : vector<4x256xf32> to vector<1x256xf32>
    %71 = vector.extract_strided_slice %4 {offsets = [2, 0, 0], sizes = [1, 8, 256], strides = [1, 1, 1]} : vector<4x8x256xf32> to vector<1x8x256xf32>
    %72 = vector.shape_cast %71 : vector<1x8x256xf32> to vector<8x256xf32>
    %73 = vector.broadcast %70 : vector<1x256xf32> to vector<8x256xf32>
    %74 = arith.mulf %73, %72 : vector<8x256xf32>
    %75 = arith.addf %69, %74 : vector<8x256xf32>
    %76 = vector.extract_strided_slice %1 {offsets = [3, 0], sizes = [1, 256], strides = [1, 1]} : vector<4x256xf32> to vector<1x256xf32>
    %77 = vector.extract_strided_slice %4 {offsets = [3, 0, 0], sizes = [1, 8, 256], strides = [1, 1, 1]} : vector<4x8x256xf32> to vector<1x8x256xf32>
    %78 = vector.shape_cast %77 : vector<1x8x256xf32> to vector<8x256xf32>
    %79 = vector.broadcast %76 : vector<1x256xf32> to vector<8x256xf32>
    %80 = arith.mulf %79, %78 : vector<8x256xf32>
    %81 = arith.addf %63, %80 : vector<8x256xf32>
    %82 = vector.extract_strided_slice %3 {offsets = [3, 0], sizes = [1, 256], strides = [1, 1]} : vector<4x256xf32> to vector<1x256xf32>
    %83 = vector.extract_strided_slice %5 {offsets = [3, 0, 0], sizes = [1, 8, 256], strides = [1, 1, 1]} : vector<4x8x256xf32> to vector<1x8x256xf32>
    %84 = vector.shape_cast %83 : vector<1x8x256xf32> to vector<8x256xf32>
    %85 = vector.broadcast %82 : vector<1x256xf32> to vector<8x256xf32>
    %86 = arith.mulf %85, %84 : vector<8x256xf32>
    %87 = arith.subf %81, %86 : vector<8x256xf32>
    %88 = vector.extract_strided_slice %1 {offsets = [3, 0], sizes = [1, 256], strides = [1, 1]} : vector<4x256xf32> to vector<1x256xf32>
    %89 = vector.extract_strided_slice %5 {offsets = [3, 0, 0], sizes = [1, 8, 256], strides = [1, 1, 1]} : vector<4x8x256xf32> to vector<1x8x256xf32>
    %90 = vector.shape_cast %89 : vector<1x8x256xf32> to vector<8x256xf32>
    %91 = vector.broadcast %88 : vector<1x256xf32> to vector<8x256xf32>
    %92 = arith.mulf %91, %90 : vector<8x256xf32>
    %93 = arith.addf %75, %92 : vector<8x256xf32>
    %94 = vector.extract_strided_slice %3 {offsets = [3, 0], sizes = [1, 256], strides = [1, 1]} : vector<4x256xf32> to vector<1x256xf32>
    %95 = vector.extract_strided_slice %4 {offsets = [3, 0, 0], sizes = [1, 8, 256], strides = [1, 1, 1]} : vector<4x8x256xf32> to vector<1x8x256xf32>
    %96 = vector.shape_cast %95 : vector<1x8x256xf32> to vector<8x256xf32>
    %97 = vector.broadcast %94 : vector<1x256xf32> to vector<8x256xf32>
    %98 = arith.mulf %97, %96 : vector<8x256xf32>
    %99 = arith.addf %93, %98 : vector<8x256xf32>
    %c0_11 = arith.constant 0 : index
    %c0_12 = arith.constant 0 : index
    %c0_13 = arith.constant 0 : index
    %100 = vector.load %arg6[%c0_11, %c0_12, %c0_13] : memref<1x8x256xf32, #tpu.memory_space<vmem>>, vector<1x8x256xf32>
    %101 = vector.shape_cast %100 : vector<1x8x256xf32> to vector<8x256xf32>
    %102 = vector.shape_cast %87 : vector<8x256xf32> to vector<1x8x256xf32>
    tpu.vector_store %arg6[%c0_11, %c0_12, %c0_13], %102 {strides = array<i32>} : memref<1x8x256xf32, #tpu.memory_space<vmem>>, vector<1x8x256xf32>,
    %c0_14 = arith.constant 0 : index
    %c0_15 = arith.constant 0 : index
    %c0_16 = arith.constant 0 : index
    %103 = vector.load %arg7[%c0_14, %c0_15, %c0_16] : memref<1x8x256xf32, #tpu.memory_space<vmem>>, vector<1x8x256xf32>
    %104 = vector.shape_cast %103 : vector<1x8x256xf32> to vector<8x256xf32>
    %105 = vector.shape_cast %99 : vector<8x256xf32> to vector<1x8x256xf32>
    tpu.vector_store %arg7[%c0_14, %c0_15, %c0_16], %105 {strides = array<i32>} : memref<1x8x256xf32, #tpu.memory_space<vmem>>, vector<1x8x256xf32>,
    return
  }
  func.func @transform_0(%arg0: i32, %arg1: i32) -> (i32, i32, i32) {
    %c0_i32 = arith.constant 0 : i32
    %c0_i32_0 = arith.constant 0 : i32
    return %arg0, %c0_i32, %arg1 : i32, i32, i32
  }
  func.func @transform_1(%arg0: i32, %arg1: i32) -> (i32, i32, i32) {
    %c0_i32 = arith.constant 0 : i32
    %c0_i32_0 = arith.constant 0 : i32
    return %arg0, %c0_i32, %arg1 : i32, i32, i32
  }
  func.func @transform_2(%arg0: i32, %arg1: i32) -> (i32, i32, i32) {
    %c0_i32 = arith.constant 0 : i32
    %c0_i32_0 = arith.constant 0 : i32
    %c0_i32_1 = arith.constant 0 : i32
    return %c0_i32, %c0_i32_0, %arg1 : i32, i32, i32
  }
  func.func @transform_3(%arg0: i32, %arg1: i32) -> (i32, i32, i32) {
    %c0_i32 = arith.constant 0 : i32
    %c0_i32_0 = arith.constant 0 : i32
    %c0_i32_1 = arith.constant 0 : i32
    return %c0_i32, %c0_i32_0, %arg1 : i32, i32, i32
  }
  func.func @transform_4(%arg0: i32, %arg1: i32) -> (i32, i32, i32) {
    %c0_i32 = arith.constant 0 : i32
    %c0_i32_0 = arith.constant 0 : i32
    return %arg0, %c0_i32, %arg1 : i32, i32, i32
  }
  func.func @transform_5(%arg0: i32, %arg1: i32) -> (i32, i32, i32) {
    %c0_i32 = arith.constant 0 : i32
    %c0_i32_0 = arith.constant 0 : i32
    return %arg0, %c0_i32, %arg1 : i32, i32, i32
  }
}

</mosaic_0001>

<llo_original>
// kernel: spectral_conv3d_forward.1
$region0: #{spectral_conv3d_forward.1}
  #allocation0 [shape = 'u32[]', space=smem, size = 0x4, offset = 0x4, fixed_abs, tag = 'smem constant byte address 0x4 - core index']
  #allocation1 [shape = 'u32[144,128]{1,0:T(1,128)}', space=vmem, size = 0x12000, scoped, tag = 'internal scratch']
  %s0 = inlined_call_operand.vmem [shape: f32[2,4,256], index: 0, kind: input, shape index: {}]
  %s1 = inlined_call_operand.vmem [shape: f32[2,4,256], index: 1, kind: input, shape index: {}]
  %s2 = inlined_call_operand.vmem [shape: f32[4,8,256], index: 2, kind: input, shape index: {}]
  %s3 = inlined_call_operand.vmem [shape: f32[4,8,256], index: 3, kind: input, shape index: {}]
  %s4 = inlined_call_operand.vmem [shape: f32[2,8,256], index: 4, kind: output, shape index: {0}]
  %s5 = inlined_call_operand.vmem [shape: f32[2,8,256], index: 5, kind: output, shape index: {1}]
  %6 = xla_tuple %s4, %s5
  %s7 = sld [smem:[#allocation0]]
  $region57: #{spectral_conv3d_forward.1} parent=0
    _
  %s9 = ssub.s32 1, %s7
  %s10 = scalar_select 0, %s9, %s7
  loop: start=0, step=1, limit=4
  $region2: #{spectral_conv3d_forward.1} parent=0 // loop_pre_header
    _
  $region3: #{spectral_conv3d_forward.1} parent=0 // loop_header
    %s12 = sphi 0, %s16
    %p13 = scmp.ge.s32.totalorder %s12, 4
    %s19 = sphi 0, %s31
    %s20 = sphi 0, %s27
    %s21 = sphi 0, %s19
    %s22 = sphi 0, %s20
    %s23 = sphi 0, %s21
    %s24 = sphi 0, %s22
    %s36 = sphi 0, %s38
    %s39 = sphi 0, %s36
    %s40 = sphi 0, %s39
    %s56 = sphi 0, %s40
    %s64 = sphi 0, %s66
    %s67 = sphi 0, %s64
    %s68 = sphi 0, %s67
    %s84 = sphi 0, %s68
    %s90 = sphi 0, %s92
    %s93 = sphi 0, %s90
    %s94 = sphi 0, %s93
    %s110 = sphi 0, %s94
    %s116 = sphi 0, %s118
    %s119 = sphi 0, %s116
    %s120 = sphi 0, %s119
    %s136 = sphi 0, %s120
    %s144 = sphi 0, %s146
    %s147 = sphi 0, %s144
    %s148 = sphi 0, %s147
    %s164 = sphi 0, %s148
    %s172 = sphi 0, %s174
    %s175 = sphi 0, %s172
    %s176 = sphi 0, %s175
    %s192 = sphi 0, %s176
  $region4: #{spectral_conv3d_forward.1} parent=0 // loop_header_branch
    %15 = sbr.rel (%p13) target = $region8
  $region5: #{spectral_conv3d_forward.1} parent=0 // loop_body
    %s17 = ssub.s32 %s12, 1
    %s18 = ssub.s32 %s12, 2
    %s25 = sadd.s32 1, %s20
    %p26 = scmp.ge.s32.totalorder %s25, 1
    %s27 = scalar_select %p26, 0, %s25
    %s28 = sadd.s32 1, %s19
    %s29 = scalar_select %p26, %s28, %s19
    %p30 = scmp.ge.s32.totalorder %s29, 2
    %s31 = scalar_select %p30, 0, %s29
    %s32 = ssub.s32 %s19, %s31
    %s33 = ssub.s32 %s20, %s27
    %s34 = sor.u32 %s32, %s33
    %p35 = scmp.eq.s32.totalorder %s34, 0
    %s37 = sadd.s32 %s36, 1
    %s38 = scalar_select %p35, %s36, %s37
    %p41 = pneg %p35
    %p42 = scmp.eq.s32.totalorder %s12, 1
    %p43 = por %p41, %p42
    %p44 = scmp.ne.s32.totalorder %s36, %s39
    %p45 = scmp.eq.s32.totalorder %s12, 0
    %p46 = por %p44, %p45
    %p47 = scmp.ne.s32.totalorder %s36, %s39
    %p48 = scmp.eq.s32.totalorder %s17, 1
    %p49 = por %p47, %p48
    %p50 = scmp.ne.s32.totalorder %s39, %s40
    %p51 = scmp.eq.s32.totalorder %s17, 0
    %p52 = por %p50, %p51
    %p53 = scmp.ne.s32.totalorder %s39, %s40
    %p54 = scmp.eq.s32.totalorder %s18, 1
    %p55 = por %p53, %p54
    %p57 = scmp.ne.s32.totalorder %s40, %s56
    %p58 = scmp.eq.s32.totalorder %s18, 0
    %p59 = por %p57, %p58
    %s60 = ssub.s32 %s19, %s31
    %s61 = ssub.s32 %s20, %s27
    %s62 = sor.u32 %s60, %s61
    %p63 = scmp.eq.s32.totalorder %s62, 0
    %s65 = sadd.s32 %s64, 1
    %s66 = scalar_select %p63, %s64, %s65
    %p69 = pneg %p63
    %p70 = scmp.eq.s32.totalorder %s12, 1
    %p71 = por %p69, %p70
    %p72 = scmp.ne.s32.totalorder %s64, %s67
    %p73 = scmp.eq.s32.totalorder %s12, 0
    %p74 = por %p72, %p73
    %p75 = scmp.ne.s32.totalorder %s64, %s67
    %p76 = scmp.eq.s32.totalorder %s17, 1
    %p77 = por %p75, %p76
    %p78 = scmp.ne.s32.totalorder %s67, %s68
    %p79 = scmp.eq.s32.totalorder %s17, 0
    %p80 = por %p78, %p79
    %p81 = scmp.ne.s32.totalorder %s67, %s68
    %p82 = scmp.eq.s32.totalorder %s18, 1
    %p83 = por %p81, %p82
    %p85 = scmp.ne.s32.totalorder %s68, %s84
    %p86 = scmp.eq.s32.totalorder %s18, 0
    %p87 = por %p85, %p86
    %s88 = ssub.s32 %s20, %s27
    %p89 = scmp.eq.s32.totalorder %s88, 0
    %s91 = sadd.s32 %s90, 1
    %s92 = scalar_select %p89, %s90, %s91
    %p95 = pneg %p89
    %p96 = scmp.eq.s32.totalorder %s12, 1
    %p97 = por %p95, %p96
    %p98 = scmp.ne.s32.totalorder %s90, %s93
    %p99 = scmp.eq.s32.totalorder %s12, 0
    %p100 = por %p98, %p99
    %p101 = scmp.ne.s32.totalorder %s90, %s93
    %p102 = scmp.eq.s32.totalorder %s17, 1
    %p103 = por %p101, %p102
    %p104 = scmp.ne.s32.totalorder %s93, %s94
    %p105 = scmp.eq.s32.totalorder %s17, 0
    %p106 = por %p104, %p105
    %p107 = scmp.ne.s32.totalorder %s93, %s94
    %p108 = scmp.eq.s32.totalorder %s18, 1
    %p109 = por %p107, %p108
    %p111 = scmp.ne.s32.totalorder %s94, %s110
    %p112 = scmp.eq.s32.totalorder %s18, 0
    %p113 = por %p111, %p112
    %s114 = ssub.s32 %s20, %s27
    %p115 = scmp.eq.s32.totalorder %s114, 0
    %s117 = sadd.s32 %s116, 1
    %s118 = scalar_select %p115, %s116, %s117
    %p121 = pneg %p115
    %p122 = scmp.eq.s32.totalorder %s12, 1
    %p123 = por %p121, %p122
    %p124 = scmp.ne.s32.totalorder %s116, %s119
    %p125 = scmp.eq.s32.totalorder %s12, 0
    %p126 = por %p124, %p125
    %p127 = scmp.ne.s32.totalorder %s116, %s119
    %p128 = scmp.eq.s32.totalorder %s17, 1
    %p129 = por %p127, %p128
    %p130 = scmp.ne.s32.totalorder %s119, %s120
    %p131 = scmp.eq.s32.totalorder %s17, 0
    %p132 = por %p130, %p131
    %p133 = scmp.ne.s32.totalorder %s119, %s120
    %p134 = scmp.eq.s32.totalorder %s18, 1
    %p135 = por %p133, %p134
    %p137 = scmp.ne.s32.totalorder %s120, %s136
    %p138 = scmp.eq.s32.totalorder %s18, 0
    %p139 = por %p137, %p138
    %s140 = ssub.s32 %s19, %s31
    %s141 = ssub.s32 %s20, %s27
    %s142 = sor.u32 %s140, %s141
    %p143 = scmp.eq.s32.totalorder %s142, 0
    %s145 = sadd.s32 %s144, 1
    %s146 = scalar_select %p143, %s144, %s145
    %p149 = pneg %p143
    %p150 = scmp.eq.s32.totalorder %s12, 1
    %p151 = por %p149, %p150
    %p152 = scmp.ne.s32.totalorder %s144, %s147
    %p153 = scmp.eq.s32.totalorder %s12, 0
    %p154 = por %p152, %p153
    %p155 = scmp.ne.s32.totalorder %s144, %s147
    %p156 = scmp.eq.s32.totalorder %s17, 1
    %p157 = por %p155, %p156
    %p158 = scmp.ne.s32.totalorder %s147, %s148
    %p159 = scmp.eq.s32.totalorder %s17, 0
    %p160 = por %p158, %p159
    %p161 = scmp.ne.s32.totalorder %s147, %s148
    %p162 = scmp.eq.s32.totalorder %s18, 1
    %p163 = por %p161, %p162
    %p165 = scmp.ne.s32.totalorder %s148, %s164
    %p166 = scmp.eq.s32.totalorder %s18, 0
    %p167 = por %p165, %p166
    %s168 = ssub.s32 %s19, %s31
    %s169 = ssub.s32 %s20, %s27
    %s170 = sor.u32 %s168, %s169
    %p171 = scmp.eq.s32.totalorder %s170, 0
    %s173 = sadd.s32 %s172, 1
    %s174 = scalar_select %p171, %s172, %s173
    %p177 = pneg %p171
    %p178 = scmp.eq.s32.totalorder %s12, 1
    %p179 = por %p177, %p178
    %p180 = scmp.ne.s32.totalorder %s172, %s175
    %p181 = scmp.eq.s32.totalorder %s12, 0
    %p182 = por %p180, %p181
    %p183 = scmp.ne.s32.totalorder %s172, %s175
    %p184 = scmp.eq.s32.totalorder %s17, 1
    %p185 = por %p183, %p184
    %p186 = scmp.ne.s32.totalorder %s175, %s176
    %p187 = scmp.eq.s32.totalorder %s17, 0
    %p188 = por %p186, %p187
    %p189 = scmp.ne.s32.totalorder %s175, %s176
    %p190 = scmp.eq.s32.totalorder %s18, 1
    %p191 = por %p189, %p190
    %p193 = scmp.ne.s32.totalorder %s176, %s192
    %p194 = scmp.eq.s32.totalorder %s18, 0
    %p195 = por %p193, %p194
    %p196 = scmp.le.s32.totalorder 1, %s12
    %p197 = scmp.lt.s32.totalorder %s12, 3
    %p198 = pnand %p196, %p197
    %p199 = pneg %p198
    // Predicated region
    $region9: #{spectral_conv3d_forward.1} parent=5 // pred_check
      _
    $region10: #{spectral_conv3d_forward.1} parent=5 // pred_check_branch
      %201 = sbr.rel (%p198) target = $region12
    $region11: #{spectral_conv3d_forward.1} parent=5 // pred_region
      %s202 = ssub.s32 %s12, 1
      // Predicated region
      $region13: #{spectral_conv3d_forward.1} parent=11 // pred_check
        %p203 = pneg %p106
      $region14: #{spectral_conv3d_forward.1} parent=11 // pred_check_branch
        %205 = sbr.rel (%p203) target = $region16
      $region15: #{spectral_conv3d_forward.1} parent=11 // pred_region
        %s206 = smul.u32 2, %s22
        %p207 = scmp.lt.s32.totalorder %s206, 1
        %s208 = scalar_select %p207, %s206, 1
        %s209 = smul.addr %s208, 8
        %s210 = scalar_lea.vmem %s2, %s209
        %s211 = smul.u32 2, %s22
      $region16: #{spectral_conv3d_forward.1} parent=11 // pred_fallthru
        _
      // Predicated region
      $region17: #{spectral_conv3d_forward.1} parent=11 // pred_check
        %p212 = pneg %p132
      $region18: #{spectral_conv3d_forward.1} parent=11 // pred_check_branch
        %214 = sbr.rel (%p212) target = $region20
      $region19: #{spectral_conv3d_forward.1} parent=11 // pred_region
        %s215 = smul.u32 2, %s22
        %p216 = scmp.lt.s32.totalorder %s215, 1
        %s217 = scalar_select %p216, %s215, 1
        %s218 = smul.addr %s217, 8
        %s219 = scalar_lea.vmem %s3, %s218
        %s220 = smul.u32 2, %s22
      $region20: #{spectral_conv3d_forward.1} parent=11 // pred_fallthru
        _
    $region12: #{spectral_conv3d_forward.1} parent=5 // pred_fallthru
      _
    %p221 = scmp.lt.s32.totalorder %s12, 2
    // Predicated region
    $region21: #{spectral_conv3d_forward.1} parent=5 // pred_check
      %p222 = pneg %p221
    $region22: #{spectral_conv3d_forward.1} parent=5 // pred_check_branch
      %224 = sbr.rel (%p222) target = $region24
    $region23: #{spectral_conv3d_forward.1} parent=5 // pred_region
      // Predicated region
      $region25: #{spectral_conv3d_forward.1} parent=23 // pred_check
        %p225 = pneg %p46
      $region26: #{spectral_conv3d_forward.1} parent=23 // pred_check_branch
        %227 = sbr.rel (%p225) target = $region28
      $region27: #{spectral_conv3d_forward.1} parent=23 // pred_region
        %s228 = smul.u32 2, %s20
        %p229 = scmp.lt.s32.totalorder %s19, 1
        %s230 = scalar_select %p229, %s19, 1
        %p231 = scmp.lt.s32.totalorder %s228, 1
        %s232 = scalar_select %p231, %s228, 1
        %s233 = smul.addr %s230, 2
        %s234 = sadd.s32 %s232, %s233
        %s235 = smul.addr %s234, 4
        %s236 = scalar_lea.vmem %s0, %s235
        %s237 = smul.u32 2, %s20
      $region28: #{spectral_conv3d_forward.1} parent=23 // pred_fallthru
        _
      // Predicated region
      $region29: #{spectral_conv3d_forward.1} parent=23 // pred_check
        %p238 = pneg %p74
      $region30: #{spectral_conv3d_forward.1} parent=23 // pred_check_branch
        %240 = sbr.rel (%p238) target = $region32
      $region31: #{spectral_conv3d_forward.1} parent=23 // pred_region
        %s241 = smul.u32 2, %s20
        %p242 = scmp.lt.s32.totalorder %s19, 1
        %s243 = scalar_select %p242, %s19, 1
        %p244 = scmp.lt.s32.totalorder %s241, 1
        %s245 = scalar_select %p244, %s241, 1
        %s246 = smul.addr %s243, 2
        %s247 = sadd.s32 %s245, %s246
        %s248 = smul.addr %s247, 4
        %s249 = scalar_lea.vmem %s1, %s248
        %s250 = smul.u32 2, %s20
      $region32: #{spectral_conv3d_forward.1} parent=23 // pred_fallthru
        _
    $region24: #{spectral_conv3d_forward.1} parent=5 // pred_fallthru
      _
    %p251 = scmp.le.s32.totalorder 1, %s12
    %p252 = scmp.lt.s32.totalorder %s12, 3
    %p253 = pnand %p251, %p252
    %p254 = pneg %p253
    // Predicated region
    $region33: #{spectral_conv3d_forward.1} parent=5 // pred_check
      _
    $region34: #{spectral_conv3d_forward.1} parent=5 // pred_check_branch
      %256 = sbr.rel (%p253) target = $region36
    $region35: #{spectral_conv3d_forward.1} parent=5 // pred_region
      %s257 = ssub.s32 %s12, 1
      %s258 = smul.u32 2, %s22
      %p259 = scmp.lt.s32.totalorder %s21, 1
      %s260 = scalar_select %p259, %s21, 1
      %p261 = scmp.lt.s32.totalorder %s258, 1
      %s262 = scalar_select %p261, %s258, 1
      %s263 = smul.addr %s260, 2
      %s264 = sadd.s32 %s262, %s263
      %s265 = smul.addr %s264, 4
      %s266 = scalar_lea.vmem %s0, %s265
      %p267 = pneg %p52
      %p268 = pneg %p49
      %s269 = smul.u32 2, %s22
      %p270 = scmp.lt.s32.totalorder %s21, 1
      %s271 = scalar_select %p270, %s21, 1
      %p272 = scmp.lt.s32.totalorder %s269, 1
      %s273 = scalar_select %p272, %s269, 1
      %s274 = smul.addr %s271, 2
      %s275 = sadd.s32 %s273, %s274
      %s276 = smul.addr %s275, 4
      %s277 = scalar_lea.vmem %s1, %s276
      %p278 = pneg %p80
      %p279 = pneg %p77
      %s280 = smul.u32 2, %s22
      %p281 = scmp.lt.s32.totalorder %s280, 1
      %s282 = scalar_select %p281, %s280, 1
      %s283 = smul.addr %s282, 8
      %s284 = scalar_lea.vmem %s2, %s283
      %p285 = pneg %p106
      %p286 = pneg %p103
      %s287 = smul.u32 2, %s22
      %p288 = scmp.lt.s32.totalorder %s287, 1
      %s289 = scalar_select %p288, %s287, 1
      %s290 = smul.addr %s289, 8
      %s291 = scalar_lea.vmem %s3, %s290
      %p292 = pneg %p132
      %p293 = pneg %p129
      %p294 = pneg %p160
      %p295 = pneg %p157
      %s296 = smul.u32 2, %s22
      %p297 = scmp.lt.s32.totalorder %s21, 1
      %s298 = scalar_select %p297, %s21, 1
      %p299 = scmp.lt.s32.totalorder %s296, 1
      %s300 = scalar_select %p299, %s296, 1
      %s301 = smul.addr %s298, 2
      %s302 = sadd.s32 %s300, %s301
      %s303 = smul.addr %s302, 8
      %s304 = scalar_lea.vmem %s4, %s303
      %p305 = pneg %p188
      %p306 = pneg %p185
      %s307 = smul.u32 2, %s22
      %p308 = scmp.lt.s32.totalorder %s21, 1
      %s309 = scalar_select %p308, %s21, 1
      %p310 = scmp.lt.s32.totalorder %s307, 1
      %s311 = scalar_select %p310, %s307, 1
      %s312 = smul.addr %s309, 2
      %s313 = sadd.s32 %s311, %s312
      %s314 = smul.addr %s313, 8
      %s315 = scalar_lea.vmem %s5, %s314
      %s316 = smul.u32 2, %s22
      %p317 = scmp.lt.s32.totalorder %s21, 1
      %s318 = scalar_select %p317, %s21, 1
      %p319 = scmp.lt.s32.totalorder %s316, 1
      %s320 = scalar_select %p319, %s316, 1
      %s321 = smul.addr %s318, 2
      %s322 = sadd.s32 %s320, %s321
      %s323 = smul.addr %s322, 4
      %s324 = scalar_lea.vmem %s0, %s323
      %s325 = smul.u32 2, %s22
      %s326 = smul.u32 2, %s22
      %p327 = scmp.lt.s32.totalorder %s21, 1
      %s328 = scalar_select %p327, %s21, 1
      %p329 = scmp.lt.s32.totalorder %s326, 1
      %s330 = scalar_select %p329, %s326, 1
      %s331 = smul.addr %s328, 2
      %s332 = sadd.s32 %s330, %s331
      %s333 = smul.addr %s332, 4
      %s334 = scalar_lea.vmem %s1, %s333
      %s335 = smul.u32 2, %s22
      %s336 = smul.u32 2, %s22
      %p337 = scmp.lt.s32.totalorder %s336, 1
      %s338 = scalar_select %p337, %s336, 1
      %s339 = smul.addr %s338, 8
      %s340 = scalar_lea.vmem %s2, %s339
      %s341 = smul.u32 2, %s22
      %s342 = smul.u32 2, %s22
      %p343 = scmp.lt.s32.totalorder %s342, 1
      %s344 = scalar_select %p343, %s342, 1
      %s345 = smul.addr %s344, 8
      %s346 = scalar_lea.vmem %s3, %s345
      %s347 = smul.u32 2, %s22
      %s348 = smul.u32 2, %s22
      %p349 = scmp.lt.s32.totalorder %s21, 1
      %s350 = scalar_select %p349, %s21, 1
      %p351 = scmp.lt.s32.totalorder %s348, 1
      %s352 = scalar_select %p351, %s348, 1
      %s353 = smul.addr %s350, 2
      %s354 = sadd.s32 %s352, %s353
      %s355 = smul.addr %s354, 8
      %s356 = scalar_lea.vmem %s4, %s355
      %s357 = smul.u32 2, %s22
      %s358 = smul.u32 2, %s22
      %p359 = scmp.lt.s32.totalorder %s21, 1
      %s360 = scalar_select %p359, %s21, 1
      %p361 = scmp.lt.s32.totalorder %s358, 1
      %s362 = scalar_select %p361, %s358, 1
      %s363 = smul.addr %s360, 2
      %s364 = sadd.s32 %s362, %s363
      %s365 = smul.addr %s364, 8
      %s366 = scalar_lea.vmem %s5, %s365
      %s367 = smul.u32 2, %s22
      %v368 = vld [vmem:[%s324] sm:$0xff]
      %v369 = vld [vmem:[%s334] sm:$0xff]
      %v370 = vld [vmem:[%s340] sm:$0xff]
      %v371 = vld [vmem:[%s340 + $0x8] sm:$0xff]
      %v372 = vld [vmem:[%s340 + $0x10] sm:$0xff]
      %v373 = vld [vmem:[%s340 + $0x18] sm:$0xff]
      %v374 = vld [vmem:[%s340 + $0x20] sm:$0xff]
      %v375 = vld [vmem:[%s340 + $0x28] sm:$0xff]
      %v376 = vld [vmem:[%s340 + $0x30] sm:$0xff]
      %v377 = vld [vmem:[%s340 + $0x38] sm:$0xff]
      %v378 = vld [vmem:[%s346] sm:$0xff]
      %v379 = vld [vmem:[%s346 + $0x8] sm:$0xff]
      %v380 = vld [vmem:[%s346 + $0x10] sm:$0xff]
      %v381 = vld [vmem:[%s346 + $0x18] sm:$0xff]
      %v382 = vld [vmem:[%s346 + $0x20] sm:$0xff]
      %v383 = vld [vmem:[%s346 + $0x28] sm:$0xff]
      %v384 = vld [vmem:[%s346 + $0x30] sm:$0xff]
      %v385 = vld [vmem:[%s346 + $0x38] sm:$0xff]
      %v387 = vlaneseq
      %v388 = vshrl.u32 %v387, 7
      %v389 = vsub.s32 0, %v388
      %v390 = vrot.slane %v368, %v389
      %v391 = vlaneseq
      %v392 = vshrl.u32 %v391, 7
      %v393 = vsub.s32 4, %v392
      %v394 = vrot.slane %v368, %v393
      %v397 = vlaneseq
      %v398 = vshrl.u32 %v397, 7
      %v399 = vsub.s32 0, %v398
      %v400 = vrot.slane %v390, %v399
      %v401 = vlaneseq
      %v402 = vshrl.u32 %v401, 7
      %v403 = vsub.s32 0, %v402
      %v404 = vrot.slane %v394, %v403
      %v405 = vmul.f32 %v400, %v370
      %v406 = vmul.f32 %v404, %v371
      %v408 = vlaneseq
      %v409 = vshrl.u32 %v408, 7
      %v410 = vsub.s32 0, %v409
      %v411 = vrot.slane %v369, %v410
      %v412 = vlaneseq
      %v413 = vshrl.u32 %v412, 7
      %v414 = vsub.s32 4, %v413
      %v415 = vrot.slane %v369, %v414
      %v418 = vlaneseq
      %v419 = vshrl.u32 %v418, 7
      %v420 = vsub.s32 0, %v419
      %v421 = vrot.slane %v411, %v420
      %v422 = vlaneseq
      %v423 = vshrl.u32 %v422, 7
      %v424 = vsub.s32 0, %v423
      %v425 = vrot.slane %v415, %v424
      %v426 = vmul.f32 %v421, %v378
      %v427 = vmul.f32 %v425, %v379
      %v428 = vsub.f32 %v405, %v426
      %v429 = vsub.f32 %v406, %v427
      %v430 = vmul.f32 %v400, %v378
      %v431 = vmul.f32 %v404, %v379
      %v432 = vmul.f32 %v421, %v370
      %v433 = vmul.f32 %v425, %v371
      %v434 = vadd.f32 %v430, %v432
      %v435 = vadd.f32 %v431, %v433
      %v436 = vlaneseq
      %v437 = vshrl.u32 %v436, 7
      %v438 = vsub.s32 1, %v437
      %v439 = vrot.slane %v368, %v438
      %v440 = vlaneseq
      %v441 = vshrl.u32 %v440, 7
      %v442 = vsub.s32 5, %v441
      %v443 = vrot.slane %v368, %v442
      %v446 = vlaneseq
      %v447 = vshrl.u32 %v446, 7
      %v448 = vsub.s32 1, %v447
      %v449 = vrot.slane %v439, %v448
      %v450 = vlaneseq
      %v451 = vshrl.u32 %v450, 7
      %v452 = vsub.s32 1, %v451
      %v453 = vrot.slane %v443, %v452
      %v454 = vmul.f32 %v449, %v372
      %v455 = vmul.f32 %v453, %v373
      %v456 = vadd.f32 %v428, %v454
      %v457 = vadd.f32 %v429, %v455
      %v458 = vlaneseq
      %v459 = vshrl.u32 %v458, 7
      %v460 = vsub.s32 1, %v459
      %v461 = vrot.slane %v369, %v460
      %v462 = vlaneseq
      %v463 = vshrl.u32 %v462, 7
      %v464 = vsub.s32 5, %v463
      %v465 = vrot.slane %v369, %v464
      %v468 = vlaneseq
      %v469 = vshrl.u32 %v468, 7
      %v470 = vsub.s32 1, %v469
      %v471 = vrot.slane %v461, %v470
      %v472 = vlaneseq
      %v473 = vshrl.u32 %v472, 7
      %v474 = vsub.s32 1, %v473
      %v475 = vrot.slane %v465, %v474
      %v476 = vmul.f32 %v471, %v380
      %v477 = vmul.f32 %v475, %v381
      %v478 = vsub.f32 %v456, %v476
      %v479 = vsub.f32 %v457, %v477
      %v480 = vmul.f32 %v449, %v380
      %v481 = vmul.f32 %v453, %v381
      %v482 = vadd.f32 %v434, %v480
      %v483 = vadd.f32 %v435, %v481
      %v484 = vmul.f32 %v471, %v372
      %v485 = vmul.f32 %v475, %v373
      %v486 = vadd.f32 %v482, %v484
      %v487 = vadd.f32 %v483, %v485
      %v488 = vlaneseq
      %v489 = vshrl.u32 %v488, 7
      %v490 = vsub.s32 2, %v489
      %v491 = vrot.slane %v368, %v490
      %v492 = vlaneseq
      %v493 = vshrl.u32 %v492, 7
      %v494 = vsub.s32 6, %v493
      %v495 = vrot.slane %v368, %v494
      %v498 = vlaneseq
      %v499 = vshrl.u32 %v498, 7
      %v500 = vsub.s32 2, %v499
      %v501 = vrot.slane %v491, %v500
      %v502 = vlaneseq
      %v503 = vshrl.u32 %v502, 7
      %v504 = vsub.s32 2, %v503
      %v505 = vrot.slane %v495, %v504
      %v506 = vmul.f32 %v501, %v374
      %v507 = vmul.f32 %v505, %v375
      %v508 = vadd.f32 %v478, %v506
      %v509 = vadd.f32 %v479, %v507
      %v510 = vlaneseq
      %v511 = vshrl.u32 %v510, 7
      %v512 = vsub.s32 2, %v511
      %v513 = vrot.slane %v369, %v512
      %v514 = vlaneseq
      %v515 = vshrl.u32 %v514, 7
      %v516 = vsub.s32 6, %v515
      %v517 = vrot.slane %v369, %v516
      %v520 = vlaneseq
      %v521 = vshrl.u32 %v520, 7
      %v522 = vsub.s32 2, %v521
      %v523 = vrot.slane %v513, %v522
      %v524 = vlaneseq
      %v525 = vshrl.u32 %v524, 7
      %v526 = vsub.s32 2, %v525
      %v527 = vrot.slane %v517, %v526
      %v528 = vmul.f32 %v523, %v382
      %v529 = vmul.f32 %v527, %v383
      %v530 = vsub.f32 %v508, %v528
      %v531 = vsub.f32 %v509, %v529
      %v532 = vmul.f32 %v501, %v382
      %v533 = vmul.f32 %v505, %v383
      %v534 = vadd.f32 %v486, %v532
      %v535 = vadd.f32 %v487, %v533
      %v536 = vmul.f32 %v523, %v374
      %v537 = vmul.f32 %v527, %v375
      %v538 = vadd.f32 %v534, %v536
      %v539 = vadd.f32 %v535, %v537
      %v540 = vlaneseq
      %v541 = vshrl.u32 %v540, 7
      %v542 = vsub.s32 3, %v541
      %v543 = vrot.slane %v368, %v542
      %v544 = vlaneseq
      %v545 = vshrl.u32 %v544, 7
      %v546 = vsub.s32 7, %v545
      %v547 = vrot.slane %v368, %v546
      %v550 = vlaneseq
      %v551 = vshrl.u32 %v550, 7
      %v552 = vsub.s32 3, %v551
      %v553 = vrot.slane %v543, %v552
      %v554 = vlaneseq
      %v555 = vshrl.u32 %v554, 7
      %v556 = vsub.s32 3, %v555
      %v557 = vrot.slane %v547, %v556
      %v558 = vmul.f32 %v553, %v376
      %v559 = vmul.f32 %v557, %v377
      %v560 = vadd.f32 %v530, %v558
      %v561 = vadd.f32 %v531, %v559
      %v562 = vlaneseq
      %v563 = vshrl.u32 %v562, 7
      %v564 = vsub.s32 3, %v563
      %v565 = vrot.slane %v369, %v564
      %v566 = vlaneseq
      %v567 = vshrl.u32 %v566, 7
      %v568 = vsub.s32 7, %v567
      %v569 = vrot.slane %v369, %v568
      %v572 = vlaneseq
      %v573 = vshrl.u32 %v572, 7
      %v574 = vsub.s32 3, %v573
      %v575 = vrot.slane %v565, %v574
      %v576 = vlaneseq
      %v577 = vshrl.u32 %v576, 7
      %v578 = vsub.s32 3, %v577
      %v579 = vrot.slane %v569, %v578
      %v580 = vmul.f32 %v575, %v384
      %v581 = vmul.f32 %v579, %v385
      %v582 = vsub.f32 %v560, %v580
      %v583 = vsub.f32 %v561, %v581
      %v584 = vmul.f32 %v553, %v384
      %v585 = vmul.f32 %v557, %v385
      %v586 = vadd.f32 %v538, %v584
      %v587 = vadd.f32 %v539, %v585
      %v588 = vmul.f32 %v575, %v376
      %v589 = vmul.f32 %v579, %v377
      %v590 = vadd.f32 %v586, %v588
      %v591 = vadd.f32 %v587, %v589
      %592 = vst [vmem:[%s356] sm:$0xff] %v582
      %593 = vst [vmem:[%s356 + $0x8] sm:$0xff] %v583
      %594 = vst [vmem:[%s366] sm:$0xff] %v590
      %595 = vst [vmem:[%s366 + $0x8] sm:$0xff] %v591
      %s596 = smul.u32 2, %s22
      %p597 = scmp.lt.s32.totalorder %s21, 1
      %s598 = scalar_select %p597, %s21, 1
      %p599 = scmp.lt.s32.totalorder %s596, 1
      %s600 = scalar_select %p599, %s596, 1
      %s601 = smul.addr %s598, 2
      %s602 = sadd.s32 %s600, %s601
      %s603 = smul.addr %s602, 8
      %s604 = scalar_lea.vmem %s4, %s603
      %s605 = smul.u32 2, %s22
      %p606 = scmp.lt.s32.totalorder %s21, 1
      %s607 = scalar_select %p606, %s21, 1
      %p608 = scmp.lt.s32.totalorder %s605, 1
      %s609 = scalar_select %p608, %s605, 1
      %s610 = smul.addr %s607, 2
      %s611 = sadd.s32 %s609, %s610
      %s612 = smul.addr %s611, 8
      %s613 = scalar_lea.vmem %s5, %s612
      // Predicated region
      $region37: #{spectral_conv3d_forward.1} parent=35 // pred_check
        %p614 = pneg %p157
      $region38: #{spectral_conv3d_forward.1} parent=35 // pred_check_branch
        %616 = sbr.rel (%p614) target = $region40
      $region39: #{spectral_conv3d_forward.1} parent=35 // pred_region
        %s617 = smul.u32 2, %s22
      $region40: #{spectral_conv3d_forward.1} parent=35 // pred_fallthru
        _
      // Predicated region
      $region41: #{spectral_conv3d_forward.1} parent=35 // pred_check
        %p618 = pneg %p185
      $region42: #{spectral_conv3d_forward.1} parent=35 // pred_check_branch
        %620 = sbr.rel (%p618) target = $region44
      $region43: #{spectral_conv3d_forward.1} parent=35 // pred_region
        %s621 = smul.u32 2, %s22
      $region44: #{spectral_conv3d_forward.1} parent=35 // pred_fallthru
        _
    $region36: #{spectral_conv3d_forward.1} parent=5 // pred_fallthru
      _
    %p622 = scmp.le.s32.totalorder 2, %s12
    // Predicated region
    $region45: #{spectral_conv3d_forward.1} parent=5 // pred_check
      %p623 = pneg %p622
    $region46: #{spectral_conv3d_forward.1} parent=5 // pred_check_branch
      %625 = sbr.rel (%p623) target = $region48
    $region47: #{spectral_conv3d_forward.1} parent=5 // pred_region
      %s626 = ssub.s32 %s12, 2
      // Predicated region
      $region49: #{spectral_conv3d_forward.1} parent=47 // pred_check
        %p627 = pneg %p163
      $region50: #{spectral_conv3d_forward.1} parent=47 // pred_check_branch
        %629 = sbr.rel (%p627) target = $region52
      $region51: #{spectral_conv3d_forward.1} parent=47 // pred_region
        %s630 = smul.u32 2, %s24
        %p631 = scmp.lt.s32.totalorder %s23, 1
        %s632 = scalar_select %p631, %s23, 1
        %p633 = scmp.lt.s32.totalorder %s630, 1
        %s634 = scalar_select %p633, %s630, 1
        %s635 = smul.addr %s632, 2
        %s636 = sadd.s32 %s634, %s635
        %s637 = smul.addr %s636, 8
        %s638 = scalar_lea.vmem %s4, %s637
      $region52: #{spectral_conv3d_forward.1} parent=47 // pred_fallthru
        _
      // Predicated region
      $region53: #{spectral_conv3d_forward.1} parent=47 // pred_check
        %p639 = pneg %p191
      $region54: #{spectral_conv3d_forward.1} parent=47 // pred_check_branch
        %641 = sbr.rel (%p639) target = $region56
      $region55: #{spectral_conv3d_forward.1} parent=47 // pred_region
        %s642 = smul.u32 2, %s24
        %p643 = scmp.lt.s32.totalorder %s23, 1
        %s644 = scalar_select %p643, %s23, 1
        %p645 = scmp.lt.s32.totalorder %s642, 1
        %s646 = scalar_select %p645, %s642, 1
        %s647 = smul.addr %s644, 2
        %s648 = sadd.s32 %s646, %s647
        %s649 = smul.addr %s648, 8
        %s650 = scalar_lea.vmem %s5, %s649
      $region56: #{spectral_conv3d_forward.1} parent=47 // pred_fallthru
        _
    $region48: #{spectral_conv3d_forward.1} parent=5 // pred_fallthru
      _
  $region6: #{spectral_conv3d_forward.1} parent=0 // loop_footer
    %s16 = sadd.s32 1, %s12
  $region7: #{spectral_conv3d_forward.1} parent=0 // loop_footer_branch
    %11 = sbr.rel target = $region3
  $region8: #{spectral_conv3d_forward.1} parent=0 // loop_exit
    _

// kernel: reverse.1
$region0: #{reverse.1}
  #allocation0 [shape = 's32[1]{0}', space=sflag, size = 0x4, scoped, tag = 'scoped memory for reverse.1']
  %s0 = inlined_call_operand.vmem [shape: f32[2,8,16,16,7], index: 0, kind: input, shape index: {}]
  %s1 = inlined_call_operand.vmem [shape: f32[2,8,16,16,7], index: 1, kind: output, shape index: {}]
  %s2 = scalar_lea.vmem %s0, 96
  %v3 = vld [vmem:[%s2] sm:$0xff]
  %4 = vst [vmem:[%s1] sm:$0xff] %v3
  %s5 = scalar_lea.vmem %s0, 992
  %v6 = vld [vmem:[%s5] sm:$0xff]
  %s7 = scalar_lea.vmem %s1, 896
  %8 = vst [vmem:[%s7] sm:$0xff] %v6
  %s9 = scalar_lea.vmem %s0, 208
  %v10 = vld [vmem:[%s9] sm:$0xff]
  %s11 = scalar_lea.vmem %s1, 112
  %12 = vst [vmem:[%s11] sm:$0xff] %v10
  %s13 = scalar_lea.vmem %s0, 1104
  %v14 = vld [vmem:[%s13] sm:$0xff]
  %s15 = scalar_lea.vmem %s1, 1008
  %16 = vst [vmem:[%s15] sm:$0xff] %v14
  %s17 = scalar_lea.vmem %s0, 320
  %v18 = vld [vmem:[%s17] sm:$0xff]
  %s19 = scalar_lea.vmem %s1, 224
  %20 = vst [vmem:[%s19] sm:$0xff] %v18
  %s21 = scalar_lea.vmem %s0, 1216
  %v22 = vld [vmem:[%s21] sm:$0xff]
  %s23 = scalar_lea.vmem %s1, 1120
  %24 = vst [vmem:[%s23] sm:$0xff] %v22
  %s25 = scalar_lea.vmem %s0, 432
  %v26 = vld [vmem:[%s25] sm:$0xff]
  %s27 = scalar_lea.vmem %s1, 336
  %28 = vst [vmem:[%s27] sm:$0xff] %v26
  %s29 = scalar_lea.vmem %s0, 1328
  %v30 = vld [vmem:[%s29] sm:$0xff]
  %s31 = scalar_lea.vmem %s1, 1232
  %32 = vst [vmem:[%s31] sm:$0xff] %v30
  %s33 = scalar_lea.vmem %s0, 544
  %v34 = vld [vmem:[%s33] sm:$0xff]
  %s35 = scalar_lea.vmem %s1, 448
  %36 = vst [vmem:[%s35] sm:$0xff] %v34
  %s37 = scalar_lea.vmem %s0, 1440
  %v38 = vld [vmem:[%s37] sm:$0xff]
  %s39 = scalar_lea.vmem %s1, 1344
  %40 = vst [vmem:[%s39] sm:$0xff] %v38
  %s41 = scalar_lea.vmem %s0, 656
  %v42 = vld [vmem:[%s41] sm:$0xff]
  %s43 = scalar_lea.vmem %s1, 560
  %44 = vst [vmem:[%s43] sm:$0xff] %v42
  %s45 = scalar_lea.vmem %s0, 1552
  %v46 = vld [vmem:[%s45] sm:$0xff]
  %s47 = scalar_lea.vmem %s1, 1456
  %48 = vst [vmem:[%s47] sm:$0xff] %v46
  %s49 = scalar_lea.vmem %s0, 768
  %v50 = vld [vmem:[%s49] sm:$0xff]
  %s51 = scalar_lea.vmem %s1, 672
  %52 = vst [vmem:[%s51] sm:$0xff] %v50
  %s53 = scalar_lea.vmem %s0, 1664
  %v54 = vld [vmem:[%s53] sm:$0xff]
  %s55 = scalar_lea.vmem %s1, 1568
  %56 = vst [vmem:[%s55] sm:$0xff] %v54
  %s57 = scalar_lea.vmem %s0, 880
  %v58 = vld [vmem:[%s57] sm:$0xff]
  %s59 = scalar_lea.vmem %s1, 784
  %60 = vst [vmem:[%s59] sm:$0xff] %v58
  %s61 = scalar_lea.vmem %s0, 1776
  %v62 = vld [vmem:[%s61] sm:$0xff]
  %s63 = scalar_lea.vmem %s1, 1680
  %64 = vst [vmem:[%s63] sm:$0xff] %v62
  %s65 = scalar_lea.vmem %s0, 80
  %v66 = vld [vmem:[%s65] sm:$0xff]
  %s67 = scalar_lea.vmem %s1, 16
  %68 = vst [vmem:[%s67] sm:$0xff] %v66
  %s69 = scalar_lea.vmem %s0, 976
  %v70 = vld [vmem:[%s69] sm:$0xff]
  %s71 = scalar_lea.vmem %s1, 912
  %72 = vst [vmem:[%s71] sm:$0xff] %v70
  %s73 = scalar_lea.vmem %s0, 192
  %v74 = vld [vmem:[%s73] sm:$0xff]
  %s75 = scalar_lea.vmem %s1, 128
  %76 = vst [vmem:[%s75] sm:$0xff] %v74
  %s77 = scalar_lea.vmem %s0, 1088
  %v78 = vld [vmem:[%s77] sm:$0xff]
  %s79 = scalar_lea.vmem %s1, 1024
  %80 = vst [vmem:[%s79] sm:$0xff] %v78
  %s81 = scalar_lea.vmem %s0, 304
  %v82 = vld [vmem:[%s81] sm:$0xff]
  %s83 = scalar_lea.vmem %s1, 240
  %84 = vst [vmem:[%s83] sm:$0xff] %v82
  %s85 = scalar_lea.vmem %s0, 1200
  %v86 = vld [vmem:[%s85] sm:$0xff]
  %s87 = scalar_lea.vmem %s1, 1136
  %88 = vst [vmem:[%s87] sm:$0xff] %v86
  %s89 = scalar_lea.vmem %s0, 416
  %v90 = vld [vmem:[%s89] sm:$0xff]
  %s91 = scalar_lea.vmem %s1, 352
  %92 = vst [vmem:[%s91] sm:$0xff] %v90
  %s93 = scalar_lea.vmem %s0, 1312
  %v94 = vld [vmem:[%s93] sm:$0xff]
  %s95 = scalar_lea.vmem %s1, 1248
  %96 = vst [vmem:[%s95] sm:$0xff] %v94
  %s97 = scalar_lea.vmem %s0, 528
  %v98 = vld [vmem:[%s97] sm:$0xff]
  %s99 = scalar_lea.vmem %s1, 464
  %100 = vst [vmem:[%s99] sm:$0xff] %v98
  %s101 = scalar_lea.vmem %s0, 1424
  %v102 = vld [vmem:[%s101] sm:$0xff]
  %s103 = scalar_lea.vmem %s1, 1360
  %104 = vst [vmem:[%s103] sm:$0xff] %v102
  %s105 = scalar_lea.vmem %s0, 640
  %v106 = vld [vmem:[%s105] sm:$0xff]
  %s107 = scalar_lea.vmem %s1, 576
  %108 = vst [vmem:[%s107] sm:$0xff] %v106
  %s109 = scalar_lea.vmem %s0, 1536
  %v110 = vld [vmem:[%s109] sm:$0xff]
  %s111 = scalar_lea.vmem %s1, 1472
  %112 = vst [vmem:[%s111] sm:$0xff] %v110
  %s113 = scalar_lea.vmem %s0, 752
  %v114 = vld [vmem:[%s113] sm:$0xff]
  %s115 = scalar_lea.vmem %s1, 688
  %116 = vst [vmem:[%s115] sm:$0xff] %v114
  %s117 = scalar_lea.vmem %s0, 1648
  %v118 = vld [vmem:[%s117] sm:$0xff]
  %s119 = scalar_lea.vmem %s1, 1584
  %120 = vst [vmem:[%s119] sm:$0xff] %v118
  %s121 = scalar_lea.vmem %s0, 864
  %v122 = vld [vmem:[%s121] sm:$0xff]
  %s123 = scalar_lea.vmem %s1, 800
  %124 = vst [vmem:[%s123] sm:$0xff] %v122
  %s125 = scalar_lea.vmem %s0, 1760
  %v126 = vld [vmem:[%s125] sm:$0xff]
  %s127 = scalar_lea.vmem %s1, 1696
  %128 = vst [vmem:[%s127] sm:$0xff] %v126
  %s129 = scalar_lea.vmem %s0, 64
  %v130 = vld [vmem:[%s129] sm:$0xff]
  %s131 = scalar_lea.vmem %s1, 32
  %132 = vst [vmem:[%s131] sm:$0xff] %v130
  %s133 = scalar_lea.vmem %s0, 960
  %v134 = vld [vmem:[%s133] sm:$0xff]
  %s135 = scalar_lea.vmem %s1, 928
  %136 = vst [vmem:[%s135] sm:$0xff] %v134
  %s137 = scalar_lea.vmem %s0, 176
  %v138 = vld [vmem:[%s137] sm:$0xff]
  %s139 = scalar_lea.vmem %s1, 144
  %140 = vst [vmem:[%s139] sm:$0xff] %v138
  %s141 = scalar_lea.vmem %s0, 1072
  %v142 = vld [vmem:[%s141] sm:$0xff]
  %s143 = scalar_lea.vmem %s1, 1040
  %144 = vst [vmem:[%s143] sm:$0xff] %v142
  %s145 = scalar_lea.vmem %s0, 288
  %v146 = vld [vmem:[%s145] sm:$0xff]
  %s147 = scalar_lea.vmem %s1, 256
  %148 = vst [vmem:[%s147] sm:$0xff] %v146
  %s149 = scalar_lea.vmem %s0, 1184
  %v150 = vld [vmem:[%s149] sm:$0xff]
  %s151 = scalar_lea.vmem %s1, 1152
  %152 = vst [vmem:[%s151] sm:$0xff] %v150
  %s153 = scalar_lea.vmem %s0, 400
  %v154 = vld [vmem:[%s153] sm:$0xff]
  %s155 = scalar_lea.vmem %s1, 368
  %156 = vst [vmem:[%s155] sm:$0xff] %v154
  %s157 = scalar_lea.vmem %s0, 1296
  %v158 = vld [vmem:[%s157] sm:$0xff]
  %s159 = scalar_lea.vmem %s1, 1264
  %160 = vst [vmem:[%s159] sm:$0xff] %v158
  %s161 = scalar_lea.vmem %s0, 512
  %v162 = vld [vmem:[%s161] sm:$0xff]
  %s163 = scalar_lea.vmem %s1, 480
  %164 = vst [vmem:[%s163] sm:$0xff] %v162
  %s165 = scalar_lea.vmem %s0, 1408
  %v166 = vld [vmem:[%s165] sm:$0xff]
  %s167 = scalar_lea.vmem %s1, 1376
  %168 = vst [vmem:[%s167] sm:$0xff] %v166
  %s169 = scalar_lea.vmem %s0, 624
  %v170 = vld [vmem:[%s169] sm:$0xff]
  %s171 = scalar_lea.vmem %s1, 592
  %172 = vst [vmem:[%s171] sm:$0xff] %v170
  %s173 = scalar_lea.vmem %s0, 1520
  %v174 = vld [vmem:[%s173] sm:$0xff]
  %s175 = scalar_lea.vmem %s1, 1488
  %176 = vst [vmem:[%s175] sm:$0xff] %v174
  %s177 = scalar_lea.vmem %s0, 736
  %v178 = vld [vmem:[%s177] sm:$0xff]
  %s179 = scalar_lea.vmem %s1, 704
  %180 = vst [vmem:[%s179] sm:$0xff] %v178
  %s181 = scalar_lea.vmem %s0, 1632
  %v182 = vld [vmem:[%s181] sm:$0xff]
  %s183 = scalar_lea.vmem %s1, 1600
  %184 = vst [vmem:[%s183] sm:$0xff] %v182
  %s185 = scalar_lea.vmem %s0, 848
  %v186 = vld [vmem:[%s185] sm:$0xff]
  %s187 = scalar_lea.vmem %s1, 816
  %188 = vst [vmem:[%s187] sm:$0xff] %v186
  %s189 = scalar_lea.vmem %s0, 1744
  %v190 = vld [vmem:[%s189] sm:$0xff]
  %s191 = scalar_lea.vmem %s1, 1712
  %192 = vst [vmem:[%s191] sm:$0xff] %v190
  %s193 = scalar_lea.vmem %s0, 48
  %v194 = vld [vmem:[%s193] sm:$0xff]
  %s195 = scalar_lea.vmem %s1, 48
  %196 = vst [vmem:[%s195] sm:$0xff] %v194
  %s197 = scalar_lea.vmem %s0, 944
  %v198 = vld [vmem:[%s197] sm:$0xff]
  %s199 = scalar_lea.vmem %s1, 944
  %200 = vst [vmem:[%s199] sm:$0xff] %v198
  %s201 = scalar_lea.vmem %s0, 160
  %v202 = vld [vmem:[%s201] sm:$0xff]
  %s203 = scalar_lea.vmem %s1, 160
  %204 = vst [vmem:[%s203] sm:$0xff] %v202
  %s205 = scalar_lea.vmem %s0, 1056
  %v206 = vld [vmem:[%s205] sm:$0xff]
  %s207 = scalar_lea.vmem %s1, 1056
  %208 = vst [vmem:[%s207] sm:$0xff] %v206
  %s209 = scalar_lea.vmem %s0, 272
  %v210 = vld [vmem:[%s209] sm:$0xff]
  %s211 = scalar_lea.vmem %s1, 272
  %212 = vst [vmem:[%s211] sm:$0xff] %v210
  %s213 = scalar_lea.vmem %s0, 1168
  %v214 = vld [vmem:[%s213] sm:$0xff]
  %s215 = scalar_lea.vmem %s1, 1168
  %216 = vst [vmem:[%s215] sm:$0xff] %v214
  %s217 = scalar_lea.vmem %s0, 384
  %v218 = vld [vmem:[%s217] sm:$0xff]
  %s219 = scalar_lea.vmem %s1, 384
  %220 = vst [vmem:[%s219] sm:$0xff] %v218
  %s221 = scalar_lea.vmem %s0, 1280
  %v222 = vld [vmem:[%s221] sm:$0xff]
  %s223 = scalar_lea.vmem %s1, 1280
  %224 = vst [vmem:[%s223] sm:$0xff] %v222
  %s225 = scalar_lea.vmem %s0, 496
  %v226 = vld [vmem:[%s225] sm:$0xff]
  %s227 = scalar_lea.vmem %s1, 496
  %228 = vst [vmem:[%s227] sm:$0xff] %v226
  %s229 = scalar_lea.vmem %s0, 1392
  %v230 = vld [vmem:[%s229] sm:$0xff]
  %s231 = scalar_lea.vmem %s1, 1392
  %232 = vst [vmem:[%s231] sm:$0xff] %v230
  %s233 = scalar_lea.vmem %s0, 608
  %v234 = vld [vmem:[%s233] sm:$0xff]
  %s235 = scalar_lea.vmem %s1, 608
  %236 = vst [vmem:[%s235] sm:$0xff] %v234
  %s237 = scalar_lea.vmem %s0, 1504
  %v238 = vld [vmem:[%s237] sm:$0xff]
  %s239 = scalar_lea.vmem %s1, 1504
  %240 = vst [vmem:[%s239] sm:$0xff] %v238
  %s241 = scalar_lea.vmem %s0, 720
  %v242 = vld [vmem:[%s241] sm:$0xff]
  %s243 = scalar_lea.vmem %s1, 720
  %244 = vst [vmem:[%s243] sm:$0xff] %v242
  %s245 = scalar_lea.vmem %s0, 1616
  %v246 = vld [vmem:[%s245] sm:$0xff]
  %s247 = scalar_lea.vmem %s1, 1616
  %248 = vst [vmem:[%s247] sm:$0xff] %v246
  %s249 = scalar_lea.vmem %s0, 832
  %v250 = vld [vmem:[%s249] sm:$0xff]
  %s251 = scalar_lea.vmem %s1, 832
  %252 = vst [vmem:[%s251] sm:$0xff] %v250
  %s253 = scalar_lea.vmem %s0, 1728
  %v254 = vld [vmem:[%s253] sm:$0xff]
  %s255 = scalar_lea.vmem %s1, 1728
  %256 = vst [vmem:[%s255] sm:$0xff] %v254
  %s257 = scalar_lea.vmem %s0, 32
  %v258 = vld [vmem:[%s257] sm:$0xff]
  %s259 = scalar_lea.vmem %s1, 64
  %260 = vst [vmem:[%s259] sm:$0xff] %v258
  %s261 = scalar_lea.vmem %s0, 928
  %v262 = vld [vmem:[%s261] sm:$0xff]
  %s263 = scalar_lea.vmem %s1, 960
  %264 = vst [vmem:[%s263] sm:$0xff] %v262
  %s265 = scalar_lea.vmem %s0, 144
  %v266 = vld [vmem:[%s265] sm:$0xff]
  %s267 = scalar_lea.vmem %s1, 176
  %268 = vst [vmem:[%s267] sm:$0xff] %v266
  %s269 = scalar_lea.vmem %s0, 1040
  %v270 = vld [vmem:[%s269] sm:$0xff]
  %s271 = scalar_lea.vmem %s1, 1072
  %272 = vst [vmem:[%s271] sm:$0xff] %v270
  %s273 = scalar_lea.vmem %s0, 256
  %v274 = vld [vmem:[%s273] sm:$0xff]
  %s275 = scalar_lea.vmem %s1, 288
  %276 = vst [vmem:[%s275] sm:$0xff] %v274
  %s277 = scalar_lea.vmem %s0, 1152
  %v278 = vld [vmem:[%s277] sm:$0xff]
  %s279 = scalar_lea.vmem %s1, 1184
  %280 = vst [vmem:[%s279] sm:$0xff] %v278
  %s281 = scalar_lea.vmem %s0, 368
  %v282 = vld [vmem:[%s281] sm:$0xff]
  %s283 = scalar_lea.vmem %s1, 400
  %284 = vst [vmem:[%s283] sm:$0xff] %v282
  %s285 = scalar_lea.vmem %s0, 1264
  %v286 = vld [vmem:[%s285] sm:$0xff]
  %s287 = scalar_lea.vmem %s1, 1296
  %288 = vst [vmem:[%s287] sm:$0xff] %v286
  %s289 = scalar_lea.vmem %s0, 480
  %v290 = vld [vmem:[%s289] sm:$0xff]
  %s291 = scalar_lea.vmem %s1, 512
  %292 = vst [vmem:[%s291] sm:$0xff] %v290
  %s293 = scalar_lea.vmem %s0, 1376
  %v294 = vld [vmem:[%s293] sm:$0xff]
  %s295 = scalar_lea.vmem %s1, 1408
  %296 = vst [vmem:[%s295] sm:$0xff] %v294
  %s297 = scalar_lea.vmem %s0, 592
  %v298 = vld [vmem:[%s297] sm:$0xff]
  %s299 = scalar_lea.vmem %s1, 624
  %300 = vst [vmem:[%s299] sm:$0xff] %v298
  %s301 = scalar_lea.vmem %s0, 1488
  %v302 = vld [vmem:[%s301] sm:$0xff]
  %s303 = scalar_lea.vmem %s1, 1520
  %304 = vst [vmem:[%s303] sm:$0xff] %v302
  %s305 = scalar_lea.vmem %s0, 704
  %v306 = vld [vmem:[%s305] sm:$0xff]
  %s307 = scalar_lea.vmem %s1, 736
  %308 = vst [vmem:[%s307] sm:$0xff] %v306
  %s309 = scalar_lea.vmem %s0, 1600
  %v310 = vld [vmem:[%s309] sm:$0xff]
  %s311 = scalar_lea.vmem %s1, 1632
  %312 = vst [vmem:[%s311] sm:$0xff] %v310
  %s313 = scalar_lea.vmem %s0, 816
  %v314 = vld [vmem:[%s313] sm:$0xff]
  %s315 = scalar_lea.vmem %s1, 848
  %316 = vst [vmem:[%s315] sm:$0xff] %v314
  %s317 = scalar_lea.vmem %s0, 1712
  %v318 = vld [vmem:[%s317] sm:$0xff]
  %s319 = scalar_lea.vmem %s1, 1744
  %320 = vst [vmem:[%s319] sm:$0xff] %v318
  %s321 = scalar_lea.vmem %s0, 16
  %v322 = vld [vmem:[%s321] sm:$0xff]
  %s323 = scalar_lea.vmem %s1, 80
  %324 = vst [vmem:[%s323] sm:$0xff] %v322
  %s325 = scalar_lea.vmem %s0, 912
  %v326 = vld [vmem:[%s325] sm:$0xff]
  %s327 = scalar_lea.vmem %s1, 976
  %328 = vst [vmem:[%s327] sm:$0xff] %v326
  %s329 = scalar_lea.vmem %s0, 128
  %v330 = vld [vmem:[%s329] sm:$0xff]
  %s331 = scalar_lea.vmem %s1, 192
  %332 = vst [vmem:[%s331] sm:$0xff] %v330
  %s333 = scalar_lea.vmem %s0, 1024
  %v334 = vld [vmem:[%s333] sm:$0xff]
  %s335 = scalar_lea.vmem %s1, 1088
  %336 = vst [vmem:[%s335] sm:$0xff] %v334
  %s337 = scalar_lea.vmem %s0, 240
  %v338 = vld [vmem:[%s337] sm:$0xff]
  %s339 = scalar_lea.vmem %s1, 304
  %340 = vst [vmem:[%s339] sm:$0xff] %v338
  %s341 = scalar_lea.vmem %s0, 1136
  %v342 = vld [vmem:[%s341] sm:$0xff]
  %s343 = scalar_lea.vmem %s1, 1200
  %344 = vst [vmem:[%s343] sm:$0xff] %v342
  %s345 = scalar_lea.vmem %s0, 352
  %v346 = vld [vmem:[%s345] sm:$0xff]
  %s347 = scalar_lea.vmem %s1, 416
  %348 = vst [vmem:[%s347] sm:$0xff] %v346
  %s349 = scalar_lea.vmem %s0, 1248
  %v350 = vld [vmem:[%s349] sm:$0xff]
  %s351 = scalar_lea.vmem %s1, 1312
  %352 = vst [vmem:[%s351] sm:$0xff] %v350
  %s353 = scalar_lea.vmem %s0, 464
  %v354 = vld [vmem:[%s353] sm:$0xff]
  %s355 = scalar_lea.vmem %s1, 528
  %356 = vst [vmem:[%s355] sm:$0xff] %v354
  %s357 = scalar_lea.vmem %s0, 1360
  %v358 = vld [vmem:[%s357] sm:$0xff]
  %s359 = scalar_lea.vmem %s1, 1424
  %360 = vst [vmem:[%s359] sm:$0xff] %v358
  %s361 = scalar_lea.vmem %s0, 576
  %v362 = vld [vmem:[%s361] sm:$0xff]
  %s363 = scalar_lea.vmem %s1, 640
  %364 = vst [vmem:[%s363] sm:$0xff] %v362
  %s365 = scalar_lea.vmem %s0, 1472
  %v366 = vld [vmem:[%s365] sm:$0xff]
  %s367 = scalar_lea.vmem %s1, 1536
  %368 = vst [vmem:[%s367] sm:$0xff] %v366
  %s369 = scalar_lea.vmem %s0, 688
  %v370 = vld [vmem:[%s369] sm:$0xff]
  %s371 = scalar_lea.vmem %s1, 752
  %372 = vst [vmem:[%s371] sm:$0xff] %v370
  %s373 = scalar_lea.vmem %s0, 1584
  %v374 = vld [vmem:[%s373] sm:$0xff]
  %s375 = scalar_lea.vmem %s1, 1648
  %376 = vst [vmem:[%s375] sm:$0xff] %v374
  %s377 = scalar_lea.vmem %s0, 800
  %v378 = vld [vmem:[%s377] sm:$0xff]
  %s379 = scalar_lea.vmem %s1, 864
  %380 = vst [vmem:[%s379] sm:$0xff] %v378
  %s381 = scalar_lea.vmem %s0, 1696
  %v382 = vld [vmem:[%s381] sm:$0xff]
  %s383 = scalar_lea.vmem %s1, 1760
  %384 = vst [vmem:[%s383] sm:$0xff] %v382
  %v385 = vld [vmem:[%s0] sm:$0xff]
  %s386 = scalar_lea.vmem %s1, 96
  %387 = vst [vmem:[%s386] sm:$0xff] %v385
  %s388 = scalar_lea.vmem %s0, 896
  %v389 = vld [vmem:[%s388] sm:$0xff]
  %s390 = scalar_lea.vmem %s1, 992
  %391 = vst [vmem:[%s390] sm:$0xff] %v389
  %s392 = scalar_lea.vmem %s0, 112
  %v393 = vld [vmem:[%s392] sm:$0xff]
  %s394 = scalar_lea.vmem %s1, 208
  %395 = vst [vmem:[%s394] sm:$0xff] %v393
  %s396 = scalar_lea.vmem %s0, 1008
  %v397 = vld [vmem:[%s396] sm:$0xff]
  %s398 = scalar_lea.vmem %s1, 1104
  %399 = vst [vmem:[%s398] sm:$0xff] %v397
  %s400 = scalar_lea.vmem %s0, 224
  %v401 = vld [vmem:[%s400] sm:$0xff]
  %s402 = scalar_lea.vmem %s1, 320
  %403 = vst [vmem:[%s402] sm:$0xff] %v401
  %s404 = scalar_lea.vmem %s0, 1120
  %v405 = vld [vmem:[%s404] sm:$0xff]
  %s406 = scalar_lea.vmem %s1, 1216
  %407 = vst [vmem:[%s406] sm:$0xff] %v405
  %s408 = scalar_lea.vmem %s0, 336
  %v409 = vld [vmem:[%s408] sm:$0xff]
  %s410 = scalar_lea.vmem %s1, 432
  %411 = vst [vmem:[%s410] sm:$0xff] %v409
  %s412 = scalar_lea.vmem %s0, 1232
  %v413 = vld [vmem:[%s412] sm:$0xff]
  %s414 = scalar_lea.vmem %s1, 1328
  %415 = vst [vmem:[%s414] sm:$0xff] %v413
  %s416 = scalar_lea.vmem %s0, 448
  %v417 = vld [vmem:[%s416] sm:$0xff]
  %s418 = scalar_lea.vmem %s1, 544
  %419 = vst [vmem:[%s418] sm:$0xff] %v417
  %s420 = scalar_lea.vmem %s0, 1344
  %v421 = vld [vmem:[%s420] sm:$0xff]
  %s422 = scalar_lea.vmem %s1, 1440
  %423 = vst [vmem:[%s422] sm:$0xff] %v421
  %s424 = scalar_lea.vmem %s0, 560
  %v425 = vld [vmem:[%s424] sm:$0xff]
  %s426 = scalar_lea.vmem %s1, 656
  %427 = vst [vmem:[%s426] sm:$0xff] %v425
  %s428 = scalar_lea.vmem %s0, 1456
  %v429 = vld [vmem:[%s428] sm:$0xff]
  %s430 = scalar_lea.vmem %s1, 1552
  %431 = vst [vmem:[%s430] sm:$0xff] %v429
  %s432 = scalar_lea.vmem %s0, 672
  %v433 = vld [vmem:[%s432] sm:$0xff]
  %s434 = scalar_lea.vmem %s1, 768
  %435 = vst [vmem:[%s434] sm:$0xff] %v433
  %s436 = scalar_lea.vmem %s0, 1568
  %v437 = vld [vmem:[%s436] sm:$0xff]
  %s438 = scalar_lea.vmem %s1, 1664
  %439 = vst [vmem:[%s438] sm:$0xff] %v437
  %s440 = scalar_lea.vmem %s0, 784
  %v441 = vld [vmem:[%s440] sm:$0xff]
  %s442 = scalar_lea.vmem %s1, 880
  %443 = vst [vmem:[%s442] sm:$0xff] %v441
  %s444 = scalar_lea.vmem %s0, 1680
  %v445 = vld [vmem:[%s444] sm:$0xff]
  %s446 = scalar_lea.vmem %s1, 1776
  %447 = vst [vmem:[%s446] sm:$0xff] %v445
  %s448 = scalar_lea.vmem %s0, 104
  %v449 = vld [vmem:[%s448] sm:$0xff]
  %s450 = scalar_lea.vmem %s1, 8
  %451 = vst [vmem:[%s450] sm:$0xff] %v449
  %s452 = scalar_lea.vmem %s0, 1000
  %v453 = vld [vmem:[%s452] sm:$0xff]
  %s454 = scalar_lea.vmem %s1, 904
  %455 = vst [vmem:[%s454] sm:$0xff] %v453
  %s456 = scalar_lea.vmem %s0, 216
  %v457 = vld [vmem:[%s456] sm:$0xff]
  %s458 = scalar_lea.vmem %s1, 120
  %459 = vst [vmem:[%s458] sm:$0xff] %v457
  %s460 = scalar_lea.vmem %s0, 1112
  %v461 = vld [vmem:[%s460] sm:$0xff]
  %s462 = scalar_lea.vmem %s1, 1016
  %463 = vst [vmem:[%s462] sm:$0xff] %v461
  %s464 = scalar_lea.vmem %s0, 328
  %v465 = vld [vmem:[%s464] sm:$0xff]
  %s466 = scalar_lea.vmem %s1, 232
  %467 = vst [vmem:[%s466] sm:$0xff] %v465
  %s468 = scalar_lea.vmem %s0, 1224
  %v469 = vld [vmem:[%s468] sm:$0xff]
  %s470 = scalar_lea.vmem %s1, 1128
  %471 = vst [vmem:[%s470] sm:$0xff] %v469
  %s472 = scalar_lea.vmem %s0, 440
  %v473 = vld [vmem:[%s472] sm:$0xff]
  %s474 = scalar_lea.vmem %s1, 344
  %475 = vst [vmem:[%s474] sm:$0xff] %v473
  %s476 = scalar_lea.vmem %s0, 1336
  %v477 = vld [vmem:[%s476] sm:$0xff]
  %s478 = scalar_lea.vmem %s1, 1240
  %479 = vst [vmem:[%s478] sm:$0xff] %v477
  %s480 = scalar_lea.vmem %s0, 552
  %v481 = vld [vmem:[%s480] sm:$0xff]
  %s482 = scalar_lea.vmem %s1, 456
  %483 = vst [vmem:[%s482] sm:$0xff] %v481
  %s484 = scalar_lea.vmem %s0, 1448
  %v485 = vld [vmem:[%s484] sm:$0xff]
  %s486 = scalar_lea.vmem %s1, 1352
  %487 = vst [vmem:[%s486] sm:$0xff] %v485
  %s488 = scalar_lea.vmem %s0, 664
  %v489 = vld [vmem:[%s488] sm:$0xff]
  %s490 = scalar_lea.vmem %s1, 568
  %491 = vst [vmem:[%s490] sm:$0xff] %v489
  %s492 = scalar_lea.vmem %s0, 1560
  %v493 = vld [vmem:[%s492] sm:$0xff]
  %s494 = scalar_lea.vmem %s1, 1464
  %495 = vst [vmem:[%s494] sm:$0xff] %v493
  %s496 = scalar_lea.vmem %s0, 776
  %v497 = vld [vmem:[%s496] sm:$0xff]
  %s498 = scalar_lea.vmem %s1, 680
  %499 = vst [vmem:[%s498] sm:$0xff] %v497
  %s500 = scalar_lea.vmem %s0, 1672
  %v501 = vld [vmem:[%s500] sm:$0xff]
  %s502 = scalar_lea.vmem %s1, 1576
  %503 = vst [vmem:[%s502] sm:$0xff] %v501
  %s504 = scalar_lea.vmem %s0, 888
  %v505 = vld [vmem:[%s504] sm:$0xff]
  %s506 = scalar_lea.vmem %s1, 792
  %507 = vst [vmem:[%s506] sm:$0xff] %v505
  %s508 = scalar_lea.vmem %s0, 1784
  %v509 = vld [vmem:[%s508] sm:$0xff]
  %s510 = scalar_lea.vmem %s1, 1688
  %511 = vst [vmem:[%s510] sm:$0xff] %v509
  %s512 = scalar_lea.vmem %s0, 88
  %v513 = vld [vmem:[%s512] sm:$0xff]
  %s514 = scalar_lea.vmem %s1, 24
  %515 = vst [vmem:[%s514] sm:$0xff] %v513
  %s516 = scalar_lea.vmem %s0, 984
  %v517 = vld [vmem:[%s516] sm:$0xff]
  %s518 = scalar_lea.vmem %s1, 920
  %519 = vst [vmem:[%s518] sm:$0xff] %v517
  %s520 = scalar_lea.vmem %s0, 200
  %v521 = vld [vmem:[%s520] sm:$0xff]
  %s522 = scalar_lea.vmem %s1, 136
  %523 = vst [vmem:[%s522] sm:$0xff] %v521
  %s524 = scalar_lea.vmem %s0, 1096
  %v525 = vld [vmem:[%s524] sm:$0xff]
  %s526 = scalar_lea.vmem %s1, 1032
  %527 = vst [vmem:[%s526] sm:$0xff] %v525
  %s528 = scalar_lea.vmem %s0, 312
  %v529 = vld [vmem:[%s528] sm:$0xff]
  %s530 = scalar_lea.vmem %s1, 248
  %531 = vst [vmem:[%s530] sm:$0xff] %v529
  %s532 = scalar_lea.vmem %s0, 1208
  %v533 = vld [vmem:[%s532] sm:$0xff]
  %s534 = scalar_lea.vmem %s1, 1144
  %535 = vst [vmem:[%s534] sm:$0xff] %v533
  %s536 = scalar_lea.vmem %s0, 424
  %v537 = vld [vmem:[%s536] sm:$0xff]
  %s538 = scalar_lea.vmem %s1, 360
  %539 = vst [vmem:[%s538] sm:$0xff] %v537
  %s540 = scalar_lea.vmem %s0, 1320
  %v541 = vld [vmem:[%s540] sm:$0xff]
  %s542 = scalar_lea.vmem %s1, 1256
  %543 = vst [vmem:[%s542] sm:$0xff] %v541
  %s544 = scalar_lea.vmem %s0, 536
  %v545 = vld [vmem:[%s544] sm:$0xff]
  %s546 = scalar_lea.vmem %s1, 472
  %547 = vst [vmem:[%s546] sm:$0xff] %v545
  %s548 = scalar_lea.vmem %s0, 1432
  %v549 = vld [vmem:[%s548] sm:$0xff]
  %s550 = scalar_lea.vmem %s1, 1368
  %551 = vst [vmem:[%s550] sm:$0xff] %v549
  %s552 = scalar_lea.vmem %s0, 648
  %v553 = vld [vmem:[%s552] sm:$0xff]
  %s554 = scalar_lea.vmem %s1, 584
  %555 = vst [vmem:[%s554] sm:$0xff] %v553
  %s556 = scalar_lea.vmem %s0, 1544
  %v557 = vld [vmem:[%s556] sm:$0xff]
  %s558 = scalar_lea.vmem %s1, 1480
  %559 = vst [vmem:[%s558] sm:$0xff] %v557
  %s560 = scalar_lea.vmem %s0, 760
  %v561 = vld [vmem:[%s560] sm:$0xff]
  %s562 = scalar_lea.vmem %s1, 696
  %563 = vst [vmem:[%s562] sm:$0xff] %v561
  %s564 = scalar_lea.vmem %s0, 1656
  %v565 = vld [vmem:[%s564] sm:$0xff]
  %s566 = scalar_lea.vmem %s1, 1592
  %567 = vst [vmem:[%s566] sm:$0xff] %v565
  %s568 = scalar_lea.vmem %s0, 872
  %v569 = vld [vmem:[%s568] sm:$0xff]
  %s570 = scalar_lea.vmem %s1, 808
  %571 = vst [vmem:[%s570] sm:$0xff] %v569
  %s572 = scalar_lea.vmem %s0, 1768
  %v573 = vld [vmem:[%s572] sm:$0xff]
  %s574 = scalar_lea.vmem %s1, 1704
  %575 = vst [vmem:[%s574] sm:$0xff] %v573
  %s576 = scalar_lea.vmem %s0, 72
  %v577 = vld [vmem:[%s576] sm:$0xff]
  %s578 = scalar_lea.vmem %s1, 40
  %579 = vst [vmem:[%s578] sm:$0xff] %v577
  %s580 = scalar_lea.vmem %s0, 968
  %v581 = vld [vmem:[%s580] sm:$0xff]
  %s582 = scalar_lea.vmem %s1, 936
  %583 = vst [vmem:[%s582] sm:$0xff] %v581
  %s584 = scalar_lea.vmem %s0, 184
  %v585 = vld [vmem:[%s584] sm:$0xff]
  %s586 = scalar_lea.vmem %s1, 152
  %587 = vst [vmem:[%s586] sm:$0xff] %v585
  %s588 = scalar_lea.vmem %s0, 1080
  %v589 = vld [vmem:[%s588] sm:$0xff]
  %s590 = scalar_lea.vmem %s1, 1048
  %591 = vst [vmem:[%s590] sm:$0xff] %v589
  %s592 = scalar_lea.vmem %s0, 296
  %v593 = vld [vmem:[%s592] sm:$0xff]
  %s594 = scalar_lea.vmem %s1, 264
  %595 = vst [vmem:[%s594] sm:$0xff] %v593
  %s596 = scalar_lea.vmem %s0, 1192
  %v597 = vld [vmem:[%s596] sm:$0xff]
  %s598 = scalar_lea.vmem %s1, 1160
  %599 = vst [vmem:[%s598] sm:$0xff] %v597
  %s600 = scalar_lea.vmem %s0, 408
  %v601 = vld [vmem:[%s600] sm:$0xff]
  %s602 = scalar_lea.vmem %s1, 376
  %603 = vst [vmem:[%s602] sm:$0xff] %v601
  %s604 = scalar_lea.vmem %s0, 1304
  %v605 = vld [vmem:[%s604] sm:$0xff]
  %s606 = scalar_lea.vmem %s1, 1272
  %607 = vst [vmem:[%s606] sm:$0xff] %v605
  %s608 = scalar_lea.vmem %s0, 520
  %v609 = vld [vmem:[%s608] sm:$0xff]
  %s610 = scalar_lea.vmem %s1, 488
  %611 = vst [vmem:[%s610] sm:$0xff] %v609
  %s612 = scalar_lea.vmem %s0, 1416
  %v613 = vld [vmem:[%s612] sm:$0xff]
  %s614 = scalar_lea.vmem %s1, 1384
  %615 = vst [vmem:[%s614] sm:$0xff] %v613
  %s616 = scalar_lea.vmem %s0, 632
  %v617 = vld [vmem:[%s616] sm:$0xff]
  %s618 = scalar_lea.vmem %s1, 600
  %619 = vst [vmem:[%s618] sm:$0xff] %v617
  %s620 = scalar_lea.vmem %s0, 1528
  %v621 = vld [vmem:[%s620] sm:$0xff]
  %s622 = scalar_lea.vmem %s1, 1496
  %623 = vst [vmem:[%s622] sm:$0xff] %v621
  %s624 = scalar_lea.vmem %s0, 744
  %v625 = vld [vmem:[%s624] sm:$0xff]
  %s626 = scalar_lea.vmem %s1, 712
  %627 = vst [vmem:[%s626] sm:$0xff] %v625
  %s628 = scalar_lea.vmem %s0, 1640
  %v629 = vld [vmem:[%s628] sm:$0xff]
  %s630 = scalar_lea.vmem %s1, 1608
  %631 = vst [vmem:[%s630] sm:$0xff] %v629
  %s632 = scalar_lea.vmem %s0, 856
  %v633 = vld [vmem:[%s632] sm:$0xff]
  %s634 = scalar_lea.vmem %s1, 824
  %635 = vst [vmem:[%s634] sm:$0xff] %v633
  %s636 = scalar_lea.vmem %s0, 1752
  %v637 = vld [vmem:[%s636] sm:$0xff]
  %s638 = scalar_lea.vmem %s1, 1720
  %639 = vst [vmem:[%s638] sm:$0xff] %v637
  %s640 = scalar_lea.vmem %s0, 56
  %v641 = vld [vmem:[%s640] sm:$0xff]
  %s642 = scalar_lea.vmem %s1, 56
  %643 = vst [vmem:[%s642] sm:$0xff] %v641
  %s644 = scalar_lea.vmem %s0, 952
  %v645 = vld [vmem:[%s644] sm:$0xff]
  %s646 = scalar_lea.vmem %s1, 952
  %647 = vst [vmem:[%s646] sm:$0xff] %v645
  %s648 = scalar_lea.vmem %s0, 168
  %v649 = vld [vmem:[%s648] sm:$0xff]
  %s650 = scalar_lea.vmem %s1, 168
  %651 = vst [vmem:[%s650] sm:$0xff] %v649
  %s652 = scalar_lea.vmem %s0, 1064
  %v653 = vld [vmem:[%s652] sm:$0xff]
  %s654 = scalar_lea.vmem %s1, 1064
  %655 = vst [vmem:[%s654] sm:$0xff] %v653
  %s656 = scalar_lea.vmem %s0, 280
  %v657 = vld [vmem:[%s656] sm:$0xff]
  %s658 = scalar_lea.vmem %s1, 280
  %659 = vst [vmem:[%s658] sm:$0xff] %v657
  %s660 = scalar_lea.vmem %s0, 1176
  %v661 = vld [vmem:[%s660] sm:$0xff]
  %s662 = scalar_lea.vmem %s1, 1176
  %663 = vst [vmem:[%s662] sm:$0xff] %v661
  %s664 = scalar_lea.vmem %s0, 392
  %v665 = vld [vmem:[%s664] sm:$0xff]
  %s666 = scalar_lea.vmem %s1, 392
  %667 = vst [vmem:[%s666] sm:$0xff] %v665
  %s668 = scalar_lea.vmem %s0, 1288
  %v669 = vld [vmem:[%s668] sm:$0xff]
  %s670 = scalar_lea.vmem %s1, 1288
  %671 = vst [vmem:[%s670] sm:$0xff] %v669
  %s672 = scalar_lea.vmem %s0, 504
  %v673 = vld [vmem:[%s672] sm:$0xff]
  %s674 = scalar_lea.vmem %s1, 504
  %675 = vst [vmem:[%s674] sm:$0xff] %v673
  %s676 = scalar_lea.vmem %s0, 1400
  %v677 = vld [vmem:[%s676] sm:$0xff]
  %s678 = scalar_lea.vmem %s1, 1400
  %679 = vst [vmem:[%s678] sm:$0xff] %v677
  %s680 = scalar_lea.vmem %s0, 616
  %v681 = vld [vmem:[%s680] sm:$0xff]
  %s682 = scalar_lea.vmem %s1, 616
  %683 = vst [vmem:[%s682] sm:$0xff] %v681
  %s684 = scalar_lea.vmem %s0, 1512
  %v685 = vld [vmem:[%s684] sm:$0xff]
  %s686 = scalar_lea.vmem %s1, 1512
  %687 = vst [vmem:[%s686] sm:$0xff] %v685
  %s688 = scalar_lea.vmem %s0, 728
  %v689 = vld [vmem:[%s688] sm:$0xff]
  %s690 = scalar_lea.vmem %s1, 728
  %691 = vst [vmem:[%s690] sm:$0xff] %v689
  %s692 = scalar_lea.vmem %s0, 1624
  %v693 = vld [vmem:[%s692] sm:$0xff]
  %s694 = scalar_lea.vmem %s1, 1624
  %695 = vst [vmem:[%s694] sm:$0xff] %v693
  %s696 = scalar_lea.vmem %s0, 840
  %v697 = vld [vmem:[%s696] sm:$0xff]
  %s698 = scalar_lea.vmem %s1, 840
  %699 = vst [vmem:[%s698] sm:$0xff] %v697
  %s700 = scalar_lea.vmem %s0, 1736
  %v701 = vld [vmem:[%s700] sm:$0xff]
  %s702 = scalar_lea.vmem %s1, 1736
  %703 = vst [vmem:[%s702] sm:$0xff] %v701
  %s704 = scalar_lea.vmem %s0, 40
  %v705 = vld [vmem:[%s704] sm:$0xff]
  %s706 = scalar_lea.vmem %s1, 72
  %707 = vst [vmem:[%s706] sm:$0xff] %v705
  %s708 = scalar_lea.vmem %s0, 936
  %v709 = vld [vmem:[%s708] sm:$0xff]
  %s710 = scalar_lea.vmem %s1, 968
  %711 = vst [vmem:[%s710] sm:$0xff] %v709
  %s712 = scalar_lea.vmem %s0, 152
  %v713 = vld [vmem:[%s712] sm:$0xff]
  %s714 = scalar_lea.vmem %s1, 184
  %715 = vst [vmem:[%s714] sm:$0xff] %v713
  %s716 = scalar_lea.vmem %s0, 1048
  %v717 = vld [vmem:[%s716] sm:$0xff]
  %s718 = scalar_lea.vmem %s1, 1080
  %719 = vst [vmem:[%s718] sm:$0xff] %v717
  %s720 = scalar_lea.vmem %s0, 264
  %v721 = vld [vmem:[%s720] sm:$0xff]
  %s722 = scalar_lea.vmem %s1, 296
  %723 = vst [vmem:[%s722] sm:$0xff] %v721
  %s724 = scalar_lea.vmem %s0, 1160
  %v725 = vld [vmem:[%s724] sm:$0xff]
  %s726 = scalar_lea.vmem %s1, 1192
  %727 = vst [vmem:[%s726] sm:$0xff] %v725
  %s728 = scalar_lea.vmem %s0, 376
  %v729 = vld [vmem:[%s728] sm:$0xff]
  %s730 = scalar_lea.vmem %s1, 408
  %731 = vst [vmem:[%s730] sm:$0xff] %v729
  %s732 = scalar_lea.vmem %s0, 1272
  %v733 = vld [vmem:[%s732] sm:$0xff]
  %s734 = scalar_lea.vmem %s1, 1304
  %735 = vst [vmem:[%s734] sm:$0xff] %v733
  %s736 = scalar_lea.vmem %s0, 488
  %v737 = vld [vmem:[%s736] sm:$0xff]
  %s738 = scalar_lea.vmem %s1, 520
  %739 = vst [vmem:[%s738] sm:$0xff] %v737
  %s740 = scalar_lea.vmem %s0, 1384
  %v741 = vld [vmem:[%s740] sm:$0xff]
  %s742 = scalar_lea.vmem %s1, 1416
  %743 = vst [vmem:[%s742] sm:$0xff] %v741
  %s744 = scalar_lea.vmem %s0, 600
  %v745 = vld [vmem:[%s744] sm:$0xff]
  %s746 = scalar_lea.vmem %s1, 632
  %747 = vst [vmem:[%s746] sm:$0xff] %v745
  %s748 = scalar_lea.vmem %s0, 1496
  %v749 = vld [vmem:[%s748] sm:$0xff]
  %s750 = scalar_lea.vmem %s1, 1528
  %751 = vst [vmem:[%s750] sm:$0xff] %v749
  %s752 = scalar_lea.vmem %s0, 712
  %v753 = vld [vmem:[%s752] sm:$0xff]
  %s754 = scalar_lea.vmem %s1, 744
  %755 = vst [vmem:[%s754] sm:$0xff] %v753
  %s756 = scalar_lea.vmem %s0, 1608
  %v757 = vld [vmem:[%s756] sm:$0xff]
  %s758 = scalar_lea.vmem %s1, 1640
  %759 = vst [vmem:[%s758] sm:$0xff] %v757
  %s760 = scalar_lea.vmem %s0, 824
  %v761 = vld [vmem:[%s760] sm:$0xff]
  %s762 = scalar_lea.vmem %s1, 856
  %763 = vst [vmem:[%s762] sm:$0xff] %v761
  %s764 = scalar_lea.vmem %s0, 1720
  %v765 = vld [vmem:[%s764] sm:$0xff]
  %s766 = scalar_lea.vmem %s1, 1752
  %767 = vst [vmem:[%s766] sm:$0xff] %v765
  %s768 = scalar_lea.vmem %s0, 24
  %v769 = vld [vmem:[%s768] sm:$0xff]
  %s770 = scalar_lea.vmem %s1, 88
  %771 = vst [vmem:[%s770] sm:$0xff] %v769
  %s772 = scalar_lea.vmem %s0, 920
  %v773 = vld [vmem:[%s772] sm:$0xff]
  %s774 = scalar_lea.vmem %s1, 984
  %775 = vst [vmem:[%s774] sm:$0xff] %v773
  %s776 = scalar_lea.vmem %s0, 136
  %v777 = vld [vmem:[%s776] sm:$0xff]
  %s778 = scalar_lea.vmem %s1, 200
  %779 = vst [vmem:[%s778] sm:$0xff] %v777
  %s780 = scalar_lea.vmem %s0, 1032
  %v781 = vld [vmem:[%s780] sm:$0xff]
  %s782 = scalar_lea.vmem %s1, 1096
  %783 = vst [vmem:[%s782] sm:$0xff] %v781
  %s784 = scalar_lea.vmem %s0, 248
  %v785 = vld [vmem:[%s784] sm:$0xff]
  %s786 = scalar_lea.vmem %s1, 312
  %787 = vst [vmem:[%s786] sm:$0xff] %v785
  %s788 = scalar_lea.vmem %s0, 1144
  %v789 = vld [vmem:[%s788] sm:$0xff]
  %s790 = scalar_lea.vmem %s1, 1208
  %791 = vst [vmem:[%s790] sm:$0xff] %v789
  %s792 = scalar_lea.vmem %s0, 360
  %v793 = vld [vmem:[%s792] sm:$0xff]
  %s794 = scalar_lea.vmem %s1, 424
  %795 = vst [vmem:[%s794] sm:$0xff] %v793
  %s796 = scalar_lea.vmem %s0, 1256
  %v797 = vld [vmem:[%s796] sm:$0xff]
  %s798 = scalar_lea.vmem %s1, 1320
  %799 = vst [vmem:[%s798] sm:$0xff] %v797
  %s800 = scalar_lea.vmem %s0, 472
  %v801 = vld [vmem:[%s800] sm:$0xff]
  %s802 = scalar_lea.vmem %s1, 536
  %803 = vst [vmem:[%s802] sm:$0xff] %v801
  %s804 = scalar_lea.vmem %s0, 1368
  %v805 = vld [vmem:[%s804] sm:$0xff]
  %s806 = scalar_lea.vmem %s1, 1432
  %807 = vst [vmem:[%s806] sm:$0xff] %v805
  %s808 = scalar_lea.vmem %s0, 584
  %v809 = vld [vmem:[%s808] sm:$0xff]
  %s810 = scalar_lea.vmem %s1, 648
  %811 = vst [vmem:[%s810] sm:$0xff] %v809
  %s812 = scalar_lea.vmem %s0, 1480
  %v813 = vld [vmem:[%s812] sm:$0xff]
  %s814 = scalar_lea.vmem %s1, 1544
  %815 = vst [vmem:[%s814] sm:$0xff] %v813
  %s816 = scalar_lea.vmem %s0, 696
  %v817 = vld [vmem:[%s816] sm:$0xff]
  %s818 = scalar_lea.vmem %s1, 760
  %819 = vst [vmem:[%s818] sm:$0xff] %v817
  %s820 = scalar_lea.vmem %s0, 1592
  %v821 = vld [vmem:[%s820] sm:$0xff]
  %s822 = scalar_lea.vmem %s1, 1656
  %823 = vst [vmem:[%s822] sm:$0xff] %v821
  %s824 = scalar_lea.vmem %s0, 808
  %v825 = vld [vmem:[%s824] sm:$0xff]
  %s826 = scalar_lea.vmem %s1, 872
  %827 = vst [vmem:[%s826] sm:$0xff] %v825
  %s828 = scalar_lea.vmem %s0, 1704
  %v829 = vld [vmem:[%s828] sm:$0xff]
  %s830 = scalar_lea.vmem %s1, 1768
  %831 = vst [vmem:[%s830] sm:$0xff] %v829
  %s832 = scalar_lea.vmem %s0, 8
  %v833 = vld [vmem:[%s832] sm:$0xff]
  %s834 = scalar_lea.vmem %s1, 104
  %835 = vst [vmem:[%s834] sm:$0xff] %v833
  %s836 = scalar_lea.vmem %s0, 904
  %v837 = vld [vmem:[%s836] sm:$0xff]
  %s838 = scalar_lea.vmem %s1, 1000
  %839 = vst [vmem:[%s838] sm:$0xff] %v837
  %s840 = scalar_lea.vmem %s0, 120
  %v841 = vld [vmem:[%s840] sm:$0xff]
  %s842 = scalar_lea.vmem %s1, 216
  %843 = vst [vmem:[%s842] sm:$0xff] %v841
  %s844 = scalar_lea.vmem %s0, 1016
  %v845 = vld [vmem:[%s844] sm:$0xff]
  %s846 = scalar_lea.vmem %s1, 1112
  %847 = vst [vmem:[%s846] sm:$0xff] %v845
  %s848 = scalar_lea.vmem %s0, 232
  %v849 = vld [vmem:[%s848] sm:$0xff]
  %s850 = scalar_lea.vmem %s1, 328
  %851 = vst [vmem:[%s850] sm:$0xff] %v849
  %s852 = scalar_lea.vmem %s0, 1128
  %v853 = vld [vmem:[%s852] sm:$0xff]
  %s854 = scalar_lea.vmem %s1, 1224
  %855 = vst [vmem:[%s854] sm:$0xff] %v853
  %s856 = scalar_lea.vmem %s0, 344
  %v857 = vld [vmem:[%s856] sm:$0xff]
  %s858 = scalar_lea.vmem %s1, 440
  %859 = vst [vmem:[%s858] sm:$0xff] %v857
  %s860 = scalar_lea.vmem %s0, 1240
  %v861 = vld [vmem:[%s860] sm:$0xff]
  %s862 = scalar_lea.vmem %s1, 1336
  %863 = vst [vmem:[%s862] sm:$0xff] %v861
  %s864 = scalar_lea.vmem %s0, 456
  %v865 = vld [vmem:[%s864] sm:$0xff]
  %s866 = scalar_lea.vmem %s1, 552
  %867 = vst [vmem:[%s866] sm:$0xff] %v865
  %s868 = scalar_lea.vmem %s0, 1352
  %v869 = vld [vmem:[%s868] sm:$0xff]
  %s870 = scalar_lea.vmem %s1, 1448
  %871 = vst [vmem:[%s870] sm:$0xff] %v869
  %s872 = scalar_lea.vmem %s0, 568
  %v873 = vld [vmem:[%s872] sm:$0xff]
  %s874 = scalar_lea.vmem %s1, 664
  %875 = vst [vmem:[%s874] sm:$0xff] %v873
  %s876 = scalar_lea.vmem %s0, 1464
  %v877 = vld [vmem:[%s876] sm:$0xff]
  %s878 = scalar_lea.vmem %s1, 1560
  %879 = vst [vmem:[%s878] sm:$0xff] %v877
  %s880 = scalar_lea.vmem %s0, 680
  %v881 = vld [vmem:[%s880] sm:$0xff]
  %s882 = scalar_lea.vmem %s1, 776
  %883 = vst [vmem:[%s882] sm:$0xff] %v881
  %s884 = scalar_lea.vmem %s0, 1576
  %v885 = vld [vmem:[%s884] sm:$0xff]
  %s886 = scalar_lea.vmem %s1, 1672
  %887 = vst [vmem:[%s886] sm:$0xff] %v885
  %s888 = scalar_lea.vmem %s0, 792
  %v889 = vld [vmem:[%s888] sm:$0xff]
  %s890 = scalar_lea.vmem %s1, 888
  %891 = vst [vmem:[%s890] sm:$0xff] %v889
  %s892 = scalar_lea.vmem %s0, 1688
  %v893 = vld [vmem:[%s892] sm:$0xff]
  %s894 = scalar_lea.vmem %s1, 1784
  %895 = vst [vmem:[%s894] sm:$0xff] %v893

</llo_original>
